<compile_context>
chip_gen: v6e
topology: v6e:2x2x1
jax: 0.10.0
libtpu: 0.0.40
codegen_flags: <defaults>
</compile_context>

<pallas_src>
import jax
import jax.numpy as jnp
from jax import lax
from jax.experimental import pallas as pl
from jax.experimental.pallas import tpu as pltpu

EMBEDDING_DIM = 128
NUM_CLASSES = 28
FEATURE_DIM = 640  # convnextv2_nano head feature width
_LN_EPS = 1e-5

# lane-dense (multiple-of-128) widths
_H_WIDTH = 2 * EMBEDDING_DIM                          # 256 = [proj | cls] hidden
_CLS_PAD = ((NUM_CLASSES + 127) // 128) * 128         # 128 (28 padded up)
_OUT_WIDTH = EMBEDDING_DIM + _CLS_PAD                 # 256 = [emb | padded logits]


# ----------------------------------------------------------------------------
# Fused Pallas kernel
# ----------------------------------------------------------------------------
def _fused_kernel(x_ref, wbig_ref, bf_ref, g_ref, beta_ref, w2_ref, b2_ref, out_ref):
    # x_ref:    (tb, C*HW)  lane-dense input rows (no sublane padding)
    # wbig_ref: (C*HW, 2E)  GAP + encoder stub + both heads' first Linear, folded
    # bf_ref:   (1, 2E)     folded bias
    # g_ref:    (1, 2E)     [proj_gamma | cls_gamma]
    # beta_ref: (1, 2E)     [proj_beta  | cls_beta ]
    # w2_ref:   (2E, OUT)   block-diag [proj_w2, 0; 0, cls_w2_padded]
    # b2_ref:   (1, OUT)
    # out_ref:  (tb, OUT)   [:, :E] embeddings, [:, E:E+28] logits
    e = EMBEDDING_DIM

    # GAP + Linear(C->640) + Linear(640->E) for BOTH heads: one K=C*HW matmul.
    h = jnp.dot(x_ref[...], wbig_ref[...], preferred_element_type=jnp.float32)
    h = h + bf_ref[...]

    # Per-head LayerNorm (biased variance, eps inside rsqrt) + affine + SiLU.
    # Dropout(0.1) is identity in eval mode.
    def _head(v, g, beta):
        mu = jnp.mean(v, axis=-1, keepdims=True)
        var = jnp.mean((v - mu) * (v - mu), axis=-1, keepdims=True)
        ln = (v - mu) * lax.rsqrt(var + _LN_EPS) * g + beta
        return ln * jax.nn.sigmoid(ln)

    act_p = _head(h[:, :e], g_ref[:, :e], beta_ref[:, :e])     # (tb, E) proj half
    act_c = _head(h[:, e:], g_ref[:, e:], beta_ref[:, e:])     # (tb, E) cls half

    # Second Linear for both heads via the two row-halves of the block-diagonal
    # weight (no concatenated activation copy); single lane-dense store.
    out_ref[...] = (
        jnp.dot(act_p, w2_ref[:e, :], preferred_element_type=jnp.float32)
        + jnp.dot(act_c, w2_ref[e:, :], preferred_element_type=jnp.float32)
        + b2_ref[...]
    )


# ----------------------------------------------------------------------------
# Parameter folding / packing (plain JAX, tiny, runs once per jitted call)
# ----------------------------------------------------------------------------
def _fold_params(p, hw):
    e = EMBEDDING_DIM
    w1_cat = jnp.concatenate([p["proj_w1"], p["cls_w1"]], axis=1)          # (640, 2E)
    b1_cat = jnp.concatenate([p["proj_b1"], p["cls_b1"]], axis=1)          # (1, 2E)
    # Encoder stub is linear -> fold it into the first head matmul (exact).
    wf = p["enc_w"] @ w1_cat                                               # (C, 2E)
    bf = p["enc_b"] @ w1_cat + b1_cat                                      # (1, 2E)
    # Fold the GAP too: x_flat(B, C*HW) @ repeat(wf/HW, HW, 0) == GAP(x) @ wf.
    w_big = jnp.repeat(wf / hw, hw, axis=0)                                # (C*HW, 2E)

    g_cat = jnp.concatenate([p["proj_g"], p["cls_g"]], axis=1)             # (1, 2E)
    beta_cat = jnp.concatenate([p["proj_beta"], p["cls_beta"]], axis=1)    # (1, 2E)

    cls_w2_pad = jnp.pad(p["cls_w2"], ((0, 0), (0, _CLS_PAD - NUM_CLASSES)))
    cls_b2_pad = jnp.pad(p["cls_b2"], ((0, 0), (0, _CLS_PAD - NUM_CLASSES)))
    w2_cat = jnp.concatenate(
        [
            jnp.concatenate([p["proj_w2"], jnp.zeros((e, _CLS_PAD), jnp.float32)], axis=1),
            jnp.concatenate([jnp.zeros((e, e), jnp.float32), cls_w2_pad], axis=1),
        ],
        axis=0,
    )                                                                      # (2E, OUT)
    b2_cat = jnp.concatenate([p["proj_b2"], cls_b2_pad], axis=1)           # (1, OUT)
    return w_big, bf, g_cat, beta_cat, w2_cat, b2_cat


def _choose_batch_tiling(b, k):
    """Pick (padded_batch, tile_b): tile is a multiple of 8, capped so the f32
    x tile stays <= ~4 MiB per buffer (double-buffered), with an even grid of
    >= 2 steps when the batch is large enough (v7x has 2 TensorCores)."""
    b8 = ((b + 7) // 8) * 8
    bytes_per_row = k * 4
    max_tile = min(256, max(8, (4 * 1024 * 1024 // bytes_per_row) // 8 * 8))
    if b8 <= max_tile:
        if b8 >= 16:
            tile = ((b8 // 2 + 7) // 8) * 8          # 2-step even grid
            return 2 * tile, tile
        return b8, b8                                 # tiny batch: single step
    n_steps = -(-b8 // max_tile)
    if n_steps % 2:
        n_steps += 1                                  # even grid, minimal extra pad
    tile = min(max_tile, ((-(-b8 // n_steps)) + 7) // 8 * 8)
    return n_steps * tile, tile


# ----------------------------------------------------------------------------
# Forward wrapper
# ----------------------------------------------------------------------------
@jax.jit
def contrastive_classifier_forward(x, params):
    b, c, hgt, wdt = x.shape
    hw = hgt * wdt
    k = c * hw
    x_flat = x.reshape(b, k)                           # lane-dense rows (glue reshape)

    w_big, bf, g, beta, w2, b2 = _fold_params(params, hw)

    b_pad, tile_b = _choose_batch_tiling(b, k)
    if b_pad != b:
        x_flat = jnp.pad(x_flat, ((0, b_pad - b), (0, 0)))

    # Advisory cost: two head matmuls + the big folded matmul; sigmoid on EUP.
    cost = pl.CostEstimate(
        flops=2 * b_pad * k * _H_WIDTH + 4 * b_pad * EMBEDDING_DIM * _OUT_WIDTH,
        transcendentals=b_pad * _H_WIDTH,
        bytes_accessed=4 * (b_pad * k + k * _H_WIDTH
                            + _H_WIDTH * _OUT_WIDTH + b_pad * _OUT_WIDTH),
    )

    out = pl.pallas_call(
        _fused_kernel,
        out_shape=jax.ShapeDtypeStruct((b_pad, _OUT_WIDTH), jnp.float32),
        grid=(b_pad // tile_b,),
        in_specs=[
            pl.BlockSpec((tile_b, k), lambda i: (i, 0)),
            # Weights/biases: constant index_map -> stay VMEM-resident across steps.
            pl.BlockSpec((k, _H_WIDTH), lambda i: (0, 0)),
            pl.BlockSpec((1, _H_WIDTH), lambda i: (0, 0)),
            pl.BlockSpec((1, _H_WIDTH), lambda i: (0, 0)),
            pl.BlockSpec((1, _H_WIDTH), lambda i: (0, 0)),
            pl.BlockSpec((_H_WIDTH, _OUT_WIDTH), lambda i: (0, 0)),
            pl.BlockSpec((1, _OUT_WIDTH), lambda i: (0, 0)),
        ],
        out_specs=pl.BlockSpec((tile_b, _OUT_WIDTH), lambda i: (i, 0)),
        compiler_params=pltpu.CompilerParams(
            dimension_semantics=("parallel",),
            # ~13 MiB actually used at tile 256: fits v5e/v6e/v7x with headroom.
            vmem_limit_bytes=32 * 1024 * 1024,
        ),
        cost_estimate=cost,
    )(x_flat, w_big, bf, g, beta, w2, b2)

    embeddings = out[:b, :EMBEDDING_DIM]
    logits = out[:b, EMBEDDING_DIM:EMBEDDING_DIM + NUM_CLASSES]
    return embeddings, logits


# ----------------------------------------------------------------------------
# Deterministic parameter init (shapes per the module __init__)
# ----------------------------------------------------------------------------
def init_params(key, embedding_dim=EMBEDDING_DIM, num_classes=NUM_CLASSES):
    ks = jax.random.split(key, 10)
    scale = 0.02

    def dense(k_, fan_in, fan_out):
        return scale * jax.random.normal(k_, (fan_in, fan_out), jnp.float32)

    return {
        # encoder stand-in (GAP + Linear 3 -> 640)
        "enc_w": dense(ks[0], 3, FEATURE_DIM),
        "enc_b": jnp.zeros((1, FEATURE_DIM), jnp.float32),
        # projection_head: Linear(640,E) -> LN(E) -> SiLU -> Dropout -> Linear(E,E)
        "proj_w1": dense(ks[1], FEATURE_DIM, embedding_dim),
        "proj_b1": scale * jax.random.normal(ks[2], (1, embedding_dim), jnp.float32),
        "proj_g": jnp.ones((1, embedding_dim), jnp.float32),
        "proj_beta": jnp.zeros((1, embedding_dim), jnp.float32),
        "proj_w2": dense(ks[3], embedding_dim, embedding_dim),
        "proj_b2": scale * jax.random.normal(ks[4], (1, embedding_dim), jnp.float32),
        # classifier_head: Linear(640,E) -> LN(E) -> SiLU -> Dropout -> Linear(E,28)
        "cls_w1": dense(ks[5], FEATURE_DIM, embedding_dim),
        "cls_b1": scale * jax.random.normal(ks[6], (1, embedding_dim), jnp.float32),
        "cls_g": jnp.ones((1, embedding_dim), jnp.float32),
        "cls_beta": jnp.zeros((1, embedding_dim), jnp.float32),
        "cls_w2": dense(ks[7], embedding_dim, num_classes),
        "cls_b2": scale * jax.random.normal(ks[8], (1, num_classes), jnp.float32),
    }


# ----------------------------------------------------------------------------
# Pure-JAX reference (unfused, mirrors the module structure)
# ----------------------------------------------------------------------------
def _ref_head(f, w1, b1, g, beta, w2, b2):
    h = f @ w1 + b1
    mu = h.mean(-1, keepdims=True)
    var = ((h - mu) ** 2).mean(-1, keepdims=True)
    ln = (h - mu) / jnp.sqrt(var + _LN_EPS) * g + beta
    act = ln * jax.nn.sigmoid(ln)
    return act @ w2 + b2


def _ref_forward(x, p):
    b, c, h, w = x.shape
    gap = x.reshape(b, c, h * w).mean(-1)
    feats = gap @ p["enc_w"] + p["enc_b"]
    emb = _ref_head(feats, p["proj_w1"], p["proj_b1"], p["proj_g"],
                    p["proj_beta"], p["proj_w2"], p["proj_b2"])
    logits = _ref_head(feats, p["cls_w1"], p["cls_b1"], p["cls_g"],
                       p["cls_beta"], p["cls_w2"], p["cls_b2"])
    return emb, logits


if __name__ == "__main__":
    key = jax.random.PRNGKey(0)
    k_params, k_x1, k_x2, k_x3 = jax.random.split(key, 4)
    params = init_params(k_params)

    # NCHW input like the PyTorch module (small shape).
    x = jax.random.normal(k_x1, (2, 3, 32, 32), jnp.float32)
    embeddings, logits = contrastive_classifier_forward(x, params)
    jax.block_until_ready((embeddings, logits))
    assert embeddings.shape == (2, EMBEDDING_DIM)
    assert logits.shape == (2, NUM_CLASSES)

    ref_emb, ref_logits = _ref_forward(x, params)
    assert jnp.allclose(embeddings, ref_emb, atol=5e-4, rtol=1e-3)
    assert jnp.allclose(logits, ref_logits, atol=5e-4, rtol=1e-3)

    # Multi-step batch grid: B=48 -> tile 24, grid=(2,), even split for 2 TCs.
    x_big = jax.random.normal(k_x2, (48, 3, 32, 32), jnp.float32)
    emb_b, log_b = contrastive_classifier_forward(x_big, params)
    jax.block_until_ready((emb_b, log_b))
    ref_emb_b, ref_log_b = _ref_forward(x_big, params)
    assert jnp.allclose(emb_b, ref_emb_b, atol=5e-4, rtol=1e-3)
    assert jnp.allclose(log_b, ref_log_b, atol=5e-4, rtol=1e-3)

    # Non-multiple-of-8 batch exercises the pad-and-slice path (B=10 -> pad 16).
    x_odd = jax.random.normal(k_x3, (10, 3, 32, 32), jnp.float32)
    emb_o, log_o = contrastive_classifier_forward(x_odd, params)
    jax.block_until_ready((emb_o, log_o))
    ref_emb_o, ref_log_o = _ref_forward(x_odd, params)
    assert emb_o.shape == (10, EMBEDDING_DIM) and log_o.shape == (10, NUM_CLASSES)
    assert jnp.allclose(emb_o, ref_emb_o, atol=5e-4, rtol=1e-3)
    assert jnp.allclose(log_o, ref_log_o, atol=5e-4, rtol=1e-3)

    print("KERNEL_OK")
</pallas_src>

<mosaic_0001>
module attributes {stable_mosaic.version = 11 : i64} {
  func.func @_fused_kernel(%arg0: i32, %arg1: memref<8x3072xf32, #tpu.memory_space<vmem>>, %arg2: memref<3072x256xf32, #tpu.memory_space<vmem>>, %arg3: memref<1x256xf32, #tpu.memory_space<vmem>>, %arg4: memref<1x256xf32, #tpu.memory_space<vmem>>, %arg5: memref<1x256xf32, #tpu.memory_space<vmem>>, %arg6: memref<256x256xf32, #tpu.memory_space<vmem>>, %arg7: memref<1x256xf32, #tpu.memory_space<vmem>>, %arg8: memref<8x256xf32, #tpu.memory_space<vmem>>) attributes {dimension_semantics = [#tpu.dimension_semantics<parallel>], iteration_bounds = array<i64: 1>, scalar_prefetch = 0 : i64, scratch_operands = 0 : i64, tpu.core_type = #tpu.core_type<tc>, window_params = [{transform_indices = @transform_0, window_bounds = array<i64: 8, 3072>}, {pipeline_mode = #tpu.pipeline_mode<synchronous>, transform_indices = @transform_1, window_bounds = array<i64: 3072, 256>}, {pipeline_mode = #tpu.pipeline_mode<synchronous>, transform_indices = @transform_2, window_bounds = array<i64: 1, 256>}, {pipeline_mode = #tpu.pipeline_mode<synchronous>, transform_indices = @transform_3, window_bounds = array<i64: 1, 256>}, {pipeline_mode = #tpu.pipeline_mode<synchronous>, transform_indices = @transform_4, window_bounds = array<i64: 1, 256>}, {pipeline_mode = #tpu.pipeline_mode<synchronous>, transform_indices = @transform_5, window_bounds = array<i64: 256, 256>}, {pipeline_mode = #tpu.pipeline_mode<synchronous>, transform_indices = @transform_6, window_bounds = array<i64: 1, 256>}, {transform_indices = @transform_7, window_bounds = array<i64: 8, 256>}]} {
    %c0 = arith.constant 0 : index
    %c0_0 = arith.constant 0 : index
    %0 = vector.load %arg1[%c0, %c0_0] : memref<8x3072xf32, #tpu.memory_space<vmem>>, vector<8x3072xf32>
    %c0_1 = arith.constant 0 : index
    %c0_2 = arith.constant 0 : index
    %1 = vector.load %arg2[%c0_1, %c0_2] : memref<3072x256xf32, #tpu.memory_space<vmem>>, vector<3072x256xf32>
    %cst = arith.constant dense<0.000000e+00> : vector<8x256xf32>
    %2 = tpu.matmul %0, %1, %cst {dimension_numbers = #tpu.dot_dimension_numbers<[1], [0], [0], [1], [0, 0, 1, 1], [], []>} : vector<8x3072xf32>, vector<3072x256xf32>, vector<8x256xf32> -> vector<8x256xf32>
    %c0_3 = arith.constant 0 : index
    %c0_4 = arith.constant 0 : index
    %3 = vector.load %arg3[%c0_3, %c0_4] : memref<1x256xf32, #tpu.memory_space<vmem>>, vector<1x256xf32>
    %4 = vector.broadcast %3 : vector<1x256xf32> to vector<8x256xf32>
    %5 = arith.addf %2, %4 : vector<8x256xf32>
    %6 = vector.extract_strided_slice %5 {offsets = [0, 0], sizes = [8, 128], strides = [1, 1]} : vector<8x256xf32> to vector<8x128xf32>
    %c0_5 = arith.constant 0 : index
    %c0_6 = arith.constant 0 : index
    %7 = vector.load %arg4[%c0_5, %c0_6] : memref<1x256xf32, #tpu.memory_space<vmem>>, vector<1x128xf32>
    %c0_7 = arith.constant 0 : index
    %c0_8 = arith.constant 0 : index
    %8 = vector.load %arg5[%c0_7, %c0_8] : memref<1x256xf32, #tpu.memory_space<vmem>>, vector<1x128xf32>
    %cst_9 = arith.constant dense<0.000000e+00> : vector<8xf32>
    %9 = vector.multi_reduction <add>, %6, %cst_9 [1] : vector<8x128xf32> to vector<8xf32>
    %10 = vector.shape_cast %9 : vector<8xf32> to vector<8x1xf32>
    %cst_10 = arith.constant 1.280000e+02 : f32
    %11 = vector.broadcast %cst_10 : f32 to vector<8x1xf32>
    %12 = arith.divf %10, %11 : vector<8x1xf32>
    %13 = vector.broadcast %12 : vector<8x1xf32> to vector<8x128xf32>
    %14 = arith.subf %6, %13 : vector<8x128xf32>
    %15 = vector.broadcast %12 : vector<8x1xf32> to vector<8x128xf32>
    %16 = arith.subf %6, %15 : vector<8x128xf32>
    %17 = arith.mulf %14, %16 : vector<8x128xf32>
    %cst_11 = arith.constant dense<0.000000e+00> : vector<8xf32>
    %18 = vector.multi_reduction <add>, %17, %cst_11 [1] : vector<8x128xf32> to vector<8xf32>
    %19 = vector.shape_cast %18 : vector<8xf32> to vector<8x1xf32>
    %cst_12 = arith.constant 1.280000e+02 : f32
    %20 = vector.broadcast %cst_12 : f32 to vector<8x1xf32>
    %21 = arith.divf %19, %20 : vector<8x1xf32>
    %22 = vector.broadcast %12 : vector<8x1xf32> to vector<8x128xf32>
    %23 = arith.subf %6, %22 : vector<8x128xf32>
    %cst_13 = arith.constant 9.99999974E-6 : f32
    %24 = vector.broadcast %cst_13 : f32 to vector<8x1xf32>
    %25 = arith.addf %21, %24 : vector<8x1xf32>
    %26 = math.rsqrt %25 : vector<8x1xf32>
    %27 = vector.broadcast %26 : vector<8x1xf32> to vector<8x128xf32>
    %28 = arith.mulf %23, %27 : vector<8x128xf32>
    %29 = vector.broadcast %7 : vector<1x128xf32> to vector<8x128xf32>
    %30 = arith.mulf %28, %29 : vector<8x128xf32>
    %31 = vector.broadcast %8 : vector<1x128xf32> to vector<8x128xf32>
    %32 = arith.addf %30, %31 : vector<8x128xf32>
    %33 = arith.negf %32 : vector<8x128xf32>
    %34 = math.exp %33 : vector<8x128xf32>
    %cst_14 = arith.constant 1.000000e+00 : f32
    %35 = vector.broadcast %cst_14 : f32 to vector<8x128xf32>
    %36 = arith.addf %35, %34 : vector<8x128xf32>
    %37 = arith.divf %35, %36 : vector<8x128xf32>
    %38 = arith.mulf %32, %37 : vector<8x128xf32>
    %39 = vector.extract_strided_slice %5 {offsets = [0, 128], sizes = [8, 128], strides = [1, 1]} : vector<8x256xf32> to vector<8x128xf32>
    %c0_15 = arith.constant 0 : index
    %c128 = arith.constant 128 : index
    %40 = vector.load %arg4[%c0_15, %c128] : memref<1x256xf32, #tpu.memory_space<vmem>>, vector<1x128xf32>
    %c0_16 = arith.constant 0 : index
    %c128_17 = arith.constant 128 : index
    %41 = vector.load %arg5[%c0_16, %c128_17] : memref<1x256xf32, #tpu.memory_space<vmem>>, vector<1x128xf32>
    %cst_18 = arith.constant dense<0.000000e+00> : vector<8xf32>
    %42 = vector.multi_reduction <add>, %39, %cst_18 [1] : vector<8x128xf32> to vector<8xf32>
    %43 = vector.shape_cast %42 : vector<8xf32> to vector<8x1xf32>
    %cst_19 = arith.constant 1.280000e+02 : f32
    %44 = vector.broadcast %cst_19 : f32 to vector<8x1xf32>
    %45 = arith.divf %43, %44 : vector<8x1xf32>
    %46 = vector.broadcast %45 : vector<8x1xf32> to vector<8x128xf32>
    %47 = arith.subf %39, %46 : vector<8x128xf32>
    %48 = vector.broadcast %45 : vector<8x1xf32> to vector<8x128xf32>
    %49 = arith.subf %39, %48 : vector<8x128xf32>
    %50 = arith.mulf %47, %49 : vector<8x128xf32>
    %cst_20 = arith.constant dense<0.000000e+00> : vector<8xf32>
    %51 = vector.multi_reduction <add>, %50, %cst_20 [1] : vector<8x128xf32> to vector<8xf32>
    %52 = vector.shape_cast %51 : vector<8xf32> to vector<8x1xf32>
    %cst_21 = arith.constant 1.280000e+02 : f32
    %53 = vector.broadcast %cst_21 : f32 to vector<8x1xf32>
    %54 = arith.divf %52, %53 : vector<8x1xf32>
    %55 = vector.broadcast %45 : vector<8x1xf32> to vector<8x128xf32>
    %56 = arith.subf %39, %55 : vector<8x128xf32>
    %cst_22 = arith.constant 9.99999974E-6 : f32
    %57 = vector.broadcast %cst_22 : f32 to vector<8x1xf32>
    %58 = arith.addf %54, %57 : vector<8x1xf32>
    %59 = math.rsqrt %58 : vector<8x1xf32>
    %60 = vector.broadcast %59 : vector<8x1xf32> to vector<8x128xf32>
    %61 = arith.mulf %56, %60 : vector<8x128xf32>
    %62 = vector.broadcast %40 : vector<1x128xf32> to vector<8x128xf32>
    %63 = arith.mulf %61, %62 : vector<8x128xf32>
    %64 = vector.broadcast %41 : vector<1x128xf32> to vector<8x128xf32>
    %65 = arith.addf %63, %64 : vector<8x128xf32>
    %66 = arith.negf %65 : vector<8x128xf32>
    %67 = math.exp %66 : vector<8x128xf32>
    %cst_23 = arith.constant 1.000000e+00 : f32
    %68 = vector.broadcast %cst_23 : f32 to vector<8x128xf32>
    %69 = arith.addf %68, %67 : vector<8x128xf32>
    %70 = arith.divf %68, %69 : vector<8x128xf32>
    %71 = arith.mulf %65, %70 : vector<8x128xf32>
    %c0_24 = arith.constant 0 : index
    %c0_25 = arith.constant 0 : index
    %72 = vector.load %arg6[%c0_24, %c0_25] : memref<256x256xf32, #tpu.memory_space<vmem>>, vector<128x256xf32>
    %cst_26 = arith.constant dense<0.000000e+00> : vector<8x256xf32>
    %73 = tpu.matmul %38, %72, %cst_26 {dimension_numbers = #tpu.dot_dimension_numbers<[1], [0], [0], [1], [0, 0, 1, 1], [], []>} : vector<8x128xf32>, vector<128x256xf32>, vector<8x256xf32> -> vector<8x256xf32>
    %c128_27 = arith.constant 128 : index
    %c0_28 = arith.constant 0 : index
    %74 = vector.load %arg6[%c128_27, %c0_28] : memref<256x256xf32, #tpu.memory_space<vmem>>, vector<128x256xf32>
    %cst_29 = arith.constant dense<0.000000e+00> : vector<8x256xf32>
    %75 = tpu.matmul %71, %74, %cst_29 {dimension_numbers = #tpu.dot_dimension_numbers<[1], [0], [0], [1], [0, 0, 1, 1], [], []>} : vector<8x128xf32>, vector<128x256xf32>, vector<8x256xf32> -> vector<8x256xf32>
    %76 = arith.addf %73, %75 : vector<8x256xf32>
    %c0_30 = arith.constant 0 : index
    %c0_31 = arith.constant 0 : index
    %77 = vector.load %arg7[%c0_30, %c0_31] : memref<1x256xf32, #tpu.memory_space<vmem>>, vector<1x256xf32>
    %78 = vector.broadcast %77 : vector<1x256xf32> to vector<8x256xf32>
    %79 = arith.addf %76, %78 : vector<8x256xf32>
    %c0_32 = arith.constant 0 : index
    %c0_33 = arith.constant 0 : index
    %80 = vector.load %arg8[%c0_32, %c0_33] : memref<8x256xf32, #tpu.memory_space<vmem>>, vector<8x256xf32>
    tpu.vector_store %arg8[%c0_32, %c0_33], %79 {strides = array<i32>} : memref<8x256xf32, #tpu.memory_space<vmem>>, vector<8x256xf32>,
    return
  }
  func.func @transform_0(%arg0: i32) -> (i32, i32) {
    %c0_i32 = arith.constant 0 : i32
    %c0_i32_0 = arith.constant 0 : i32
    return %arg0, %c0_i32 : i32, i32
  }
  func.func @transform_1(%arg0: i32) -> (i32, i32) {
    %c0_i32 = arith.constant 0 : i32
    %c0_i32_0 = arith.constant 0 : i32
    %c0_i32_1 = arith.constant 0 : i32
    return %c0_i32, %c0_i32_0 : i32, i32
  }
  func.func @transform_2(%arg0: i32) -> (i32, i32) {
    %c0_i32 = arith.constant 0 : i32
    %c0_i32_0 = arith.constant 0 : i32
    %c0_i32_1 = arith.constant 0 : i32
    return %c0_i32, %c0_i32_0 : i32, i32
  }
  func.func @transform_3(%arg0: i32) -> (i32, i32) {
    %c0_i32 = arith.constant 0 : i32
    %c0_i32_0 = arith.constant 0 : i32
    %c0_i32_1 = arith.constant 0 : i32
    return %c0_i32, %c0_i32_0 : i32, i32
  }
  func.func @transform_4(%arg0: i32) -> (i32, i32) {
    %c0_i32 = arith.constant 0 : i32
    %c0_i32_0 = arith.constant 0 : i32
    %c0_i32_1 = arith.constant 0 : i32
    return %c0_i32, %c0_i32_0 : i32, i32
  }
  func.func @transform_5(%arg0: i32) -> (i32, i32) {
    %c0_i32 = arith.constant 0 : i32
    %c0_i32_0 = arith.constant 0 : i32
    %c0_i32_1 = arith.constant 0 : i32
    return %c0_i32, %c0_i32_0 : i32, i32
  }
  func.func @transform_6(%arg0: i32) -> (i32, i32) {
    %c0_i32 = arith.constant 0 : i32
    %c0_i32_0 = arith.constant 0 : i32
    %c0_i32_1 = arith.constant 0 : i32
    return %c0_i32, %c0_i32_0 : i32, i32
  }
  func.func @transform_7(%arg0: i32) -> (i32, i32) {
    %c0_i32 = arith.constant 0 : i32
    %c0_i32_0 = arith.constant 0 : i32
    return %arg0, %c0_i32 : i32, i32
  }
}

</mosaic_0001>

<llo_original>
// kernel: contrastive_classifier_forward.1
$region0: #{contrastive_classifier_forward.1}
  #allocation0 [shape = 'u32[]', space=smem, size = 0x4, offset = 0x4, fixed_abs, tag = 'smem constant byte address 0x4 - core index']
  #allocation1 [shape = 'u32[144,128]{1,0:T(1,128)}', space=vmem, size = 0x12000, scoped, tag = 'internal scratch']
  %s0 = inlined_call_operand.vmem [shape: f32[8,3072], index: 0, kind: input, shape index: {}]
  %s1 = inlined_call_operand.vmem [shape: f32[3072,256], index: 1, kind: input, shape index: {}]
  %s2 = inlined_call_operand.vmem [shape: f32[1,256], index: 2, kind: input, shape index: {}]
  %s3 = inlined_call_operand.vmem [shape: f32[1,256], index: 3, kind: input, shape index: {}]
  %s4 = inlined_call_operand.vmem [shape: f32[1,256], index: 4, kind: input, shape index: {}]
  %s5 = inlined_call_operand.vmem [shape: f32[256,256], index: 5, kind: input, shape index: {}]
  %s6 = inlined_call_operand.vmem [shape: f32[1,256], index: 6, kind: input, shape index: {}]
  %s7 = inlined_call_operand.vmem [shape: f32[8,256], index: 7, kind: output, shape index: {}]
  %s8 = sld [smem:[#allocation0]]
  $region38: #{contrastive_classifier_forward.1} parent=0
    _
  %s10 = ssub.s32 1, %s8
  %s11 = scalar_select 0, %s10, %s8
  // Predicated region
  $region2: #{contrastive_classifier_forward.1} parent=0 // pred_check
    _
  $region3: #{contrastive_classifier_forward.1} parent=0 // pred_check_branch
    %13 = sbr.rel (0) target = $region5
  $region4: #{contrastive_classifier_forward.1} parent=0 // pred_region
    _
  $region5: #{contrastive_classifier_forward.1} parent=0 // pred_fallthru
    _
  // Predicated region
  $region6: #{contrastive_classifier_forward.1} parent=0 // pred_check
    _
  $region7: #{contrastive_classifier_forward.1} parent=0 // pred_check_branch
    %15 = sbr.rel (0) target = $region9
  $region8: #{contrastive_classifier_forward.1} parent=0 // pred_region
    _
  $region9: #{contrastive_classifier_forward.1} parent=0 // pred_fallthru
    _
  // Predicated region
  $region10: #{contrastive_classifier_forward.1} parent=0 // pred_check
    _
  $region11: #{contrastive_classifier_forward.1} parent=0 // pred_check_branch
    %17 = sbr.rel (0) target = $region13
  $region12: #{contrastive_classifier_forward.1} parent=0 // pred_region
    _
  $region13: #{contrastive_classifier_forward.1} parent=0 // pred_fallthru
    _
  // Predicated region
  $region14: #{contrastive_classifier_forward.1} parent=0 // pred_check
    _
  $region15: #{contrastive_classifier_forward.1} parent=0 // pred_check_branch
    %19 = sbr.rel (0) target = $region17
  $region16: #{contrastive_classifier_forward.1} parent=0 // pred_region
    _
  $region17: #{contrastive_classifier_forward.1} parent=0 // pred_fallthru
    _
  // Predicated region
  $region18: #{contrastive_classifier_forward.1} parent=0 // pred_check
    _
  $region19: #{contrastive_classifier_forward.1} parent=0 // pred_check_branch
    %21 = sbr.rel (0) target = $region21
  $region20: #{contrastive_classifier_forward.1} parent=0 // pred_region
    _
  $region21: #{contrastive_classifier_forward.1} parent=0 // pred_fallthru
    _
  // Predicated region
  $region22: #{contrastive_classifier_forward.1} parent=0 // pred_check
    _
  $region23: #{contrastive_classifier_forward.1} parent=0 // pred_check_branch
    %23 = sbr.rel (0) target = $region25
  $region24: #{contrastive_classifier_forward.1} parent=0 // pred_region
    _
  $region25: #{contrastive_classifier_forward.1} parent=0 // pred_fallthru
    _
  // Predicated region
  $region26: #{contrastive_classifier_forward.1} parent=0 // pred_check
    _
  $region27: #{contrastive_classifier_forward.1} parent=0 // pred_check_branch
    %25 = sbr.rel (0) target = $region29
  $region28: #{contrastive_classifier_forward.1} parent=0 // pred_region
    _
  $region29: #{contrastive_classifier_forward.1} parent=0 // pred_fallthru
    _
  %v26 = vld [vmem:[%s0] sm:$0xff]
  %v27 = vld [vmem:[%s0 + $0x8] sm:$0xff]
  %v28 = vld [vmem:[%s0 + $0x10] sm:$0xff]
  %v29 = vld [vmem:[%s0 + $0x18] sm:$0xff]
  %v30 = vld [vmem:[%s0 + $0x20] sm:$0xff]
  %v31 = vld [vmem:[%s0 + $0x28] sm:$0xff]
  %v32 = vld [vmem:[%s0 + $0x30] sm:$0xff]
  %v33 = vld [vmem:[%s0 + $0x38] sm:$0xff]
  %v34 = vld [vmem:[%s0 + $0x40] sm:$0xff]
  %v35 = vld [vmem:[%s0 + $0x48] sm:$0xff]
  %v36 = vld [vmem:[%s0 + $0x50] sm:$0xff]
  %v37 = vld [vmem:[%s0 + $0x58] sm:$0xff]
  %v38 = vld [vmem:[%s0 + $0x60] sm:$0xff]
  %v39 = vld [vmem:[%s0 + $0x68] sm:$0xff]
  %v40 = vld [vmem:[%s0 + $0x70] sm:$0xff]
  %v41 = vld [vmem:[%s0 + $0x78] sm:$0xff]
  %v42 = vld [vmem:[%s0 + $0x80] sm:$0xff]
  %v43 = vld [vmem:[%s0 + $0x88] sm:$0xff]
  %v44 = vld [vmem:[%s0 + $0x90] sm:$0xff]
  %v45 = vld [vmem:[%s0 + $0x98] sm:$0xff]
  %v46 = vld [vmem:[%s0 + $0xa0] sm:$0xff]
  %v47 = vld [vmem:[%s0 + $0xa8] sm:$0xff]
  %v48 = vld [vmem:[%s0 + $0xb0] sm:$0xff]
  %v49 = vld [vmem:[%s0 + $0xb8] sm:$0xff]
  %v50 = vld [vmem:[%s1] sm:$0xff]
  %v51 = vld [vmem:[%s1 + $0x8] sm:$0xff]
  %v52 = vld [vmem:[%s1 + $0x10] sm:$0xff]
  %v53 = vld [vmem:[%s1 + $0x18] sm:$0xff]
  %v54 = vld [vmem:[%s1 + $0x20] sm:$0xff]
  %v55 = vld [vmem:[%s1 + $0x28] sm:$0xff]
  %v56 = vld [vmem:[%s1 + $0x30] sm:$0xff]
  %v57 = vld [vmem:[%s1 + $0x38] sm:$0xff]
  %v58 = vld [vmem:[%s1 + $0x40] sm:$0xff]
  %v59 = vld [vmem:[%s1 + $0x48] sm:$0xff]
  %v60 = vld [vmem:[%s1 + $0x50] sm:$0xff]
  %v61 = vld [vmem:[%s1 + $0x58] sm:$0xff]
  %v62 = vld [vmem:[%s1 + $0x60] sm:$0xff]
  %v63 = vld [vmem:[%s1 + $0x68] sm:$0xff]
  %v64 = vld [vmem:[%s1 + $0x70] sm:$0xff]
  %v65 = vld [vmem:[%s1 + $0x78] sm:$0xff]
  %v66 = vld [vmem:[%s1 + $0x80] sm:$0xff]
  %v67 = vld [vmem:[%s1 + $0x88] sm:$0xff]
  %v68 = vld [vmem:[%s1 + $0x90] sm:$0xff]
  %v69 = vld [vmem:[%s1 + $0x98] sm:$0xff]
  %v70 = vld [vmem:[%s1 + $0xa0] sm:$0xff]
  %v71 = vld [vmem:[%s1 + $0xa8] sm:$0xff]
  %v72 = vld [vmem:[%s1 + $0xb0] sm:$0xff]
  %v73 = vld [vmem:[%s1 + $0xb8] sm:$0xff]
  %v74 = vld [vmem:[%s1 + $0xc0] sm:$0xff]
  %v75 = vld [vmem:[%s1 + $0xc8] sm:$0xff]
  %v76 = vld [vmem:[%s1 + $0xd0] sm:$0xff]
  %v77 = vld [vmem:[%s1 + $0xd8] sm:$0xff]
  %v78 = vld [vmem:[%s1 + $0xe0] sm:$0xff]
  %v79 = vld [vmem:[%s1 + $0xe8] sm:$0xff]
  %v80 = vld [vmem:[%s1 + $0xf0] sm:$0xff]
  %v81 = vld [vmem:[%s1 + $0xf8] sm:$0xff]
  %v82 = vld [vmem:[%s1 + $0x100] sm:$0xff]
  %v83 = vld [vmem:[%s1 + $0x108] sm:$0xff]
  %v84 = vld [vmem:[%s1 + $0x110] sm:$0xff]
  %v85 = vld [vmem:[%s1 + $0x118] sm:$0xff]
  %v86 = vld [vmem:[%s1 + $0x120] sm:$0xff]
  %v87 = vld [vmem:[%s1 + $0x128] sm:$0xff]
  %v88 = vld [vmem:[%s1 + $0x130] sm:$0xff]
  %v89 = vld [vmem:[%s1 + $0x138] sm:$0xff]
  %v90 = vld [vmem:[%s1 + $0x140] sm:$0xff]
  %v91 = vld [vmem:[%s1 + $0x148] sm:$0xff]
  %v92 = vld [vmem:[%s1 + $0x150] sm:$0xff]
  %v93 = vld [vmem:[%s1 + $0x158] sm:$0xff]
  %v94 = vld [vmem:[%s1 + $0x160] sm:$0xff]
  %v95 = vld [vmem:[%s1 + $0x168] sm:$0xff]
  %v96 = vld [vmem:[%s1 + $0x170] sm:$0xff]
  %v97 = vld [vmem:[%s1 + $0x178] sm:$0xff]
  %v98 = vld [vmem:[%s1 + $0x180] sm:$0xff]
  %v99 = vld [vmem:[%s1 + $0x188] sm:$0xff]
  %v100 = vld [vmem:[%s1 + $0x190] sm:$0xff]
  %v101 = vld [vmem:[%s1 + $0x198] sm:$0xff]
  %v102 = vld [vmem:[%s1 + $0x1a0] sm:$0xff]
  %v103 = vld [vmem:[%s1 + $0x1a8] sm:$0xff]
  %v104 = vld [vmem:[%s1 + $0x1b0] sm:$0xff]
  %v105 = vld [vmem:[%s1 + $0x1b8] sm:$0xff]
  %v106 = vld [vmem:[%s1 + $0x1c0] sm:$0xff]
  %v107 = vld [vmem:[%s1 + $0x1c8] sm:$0xff]
  %v108 = vld [vmem:[%s1 + $0x1d0] sm:$0xff]
  %v109 = vld [vmem:[%s1 + $0x1d8] sm:$0xff]
  %v110 = vld [vmem:[%s1 + $0x1e0] sm:$0xff]
  %v111 = vld [vmem:[%s1 + $0x1e8] sm:$0xff]
  %v112 = vld [vmem:[%s1 + $0x1f0] sm:$0xff]
  %v113 = vld [vmem:[%s1 + $0x1f8] sm:$0xff]
  %v114 = vld [vmem:[%s1 + $0x200] sm:$0xff]
  %v115 = vld [vmem:[%s1 + $0x208] sm:$0xff]
  %v116 = vld [vmem:[%s1 + $0x210] sm:$0xff]
  %v117 = vld [vmem:[%s1 + $0x218] sm:$0xff]
  %v118 = vld [vmem:[%s1 + $0x220] sm:$0xff]
  %v119 = vld [vmem:[%s1 + $0x228] sm:$0xff]
  %v120 = vld [vmem:[%s1 + $0x230] sm:$0xff]
  %v121 = vld [vmem:[%s1 + $0x238] sm:$0xff]
  %v122 = vld [vmem:[%s1 + $0x240] sm:$0xff]
  %v123 = vld [vmem:[%s1 + $0x248] sm:$0xff]
  %v124 = vld [vmem:[%s1 + $0x250] sm:$0xff]
  %v125 = vld [vmem:[%s1 + $0x258] sm:$0xff]
  %v126 = vld [vmem:[%s1 + $0x260] sm:$0xff]
  %v127 = vld [vmem:[%s1 + $0x268] sm:$0xff]
  %v128 = vld [vmem:[%s1 + $0x270] sm:$0xff]
  %v129 = vld [vmem:[%s1 + $0x278] sm:$0xff]
  %v130 = vld [vmem:[%s1 + $0x280] sm:$0xff]
  %v131 = vld [vmem:[%s1 + $0x288] sm:$0xff]
  %v132 = vld [vmem:[%s1 + $0x290] sm:$0xff]
  %v133 = vld [vmem:[%s1 + $0x298] sm:$0xff]
  %v134 = vld [vmem:[%s1 + $0x2a0] sm:$0xff]
  %v135 = vld [vmem:[%s1 + $0x2a8] sm:$0xff]
  %v136 = vld [vmem:[%s1 + $0x2b0] sm:$0xff]
  %v137 = vld [vmem:[%s1 + $0x2b8] sm:$0xff]
  %v138 = vld [vmem:[%s1 + $0x2c0] sm:$0xff]
  %v139 = vld [vmem:[%s1 + $0x2c8] sm:$0xff]
  %v140 = vld [vmem:[%s1 + $0x2d0] sm:$0xff]
  %v141 = vld [vmem:[%s1 + $0x2d8] sm:$0xff]
  %v142 = vld [vmem:[%s1 + $0x2e0] sm:$0xff]
  %v143 = vld [vmem:[%s1 + $0x2e8] sm:$0xff]
  %v144 = vld [vmem:[%s1 + $0x2f0] sm:$0xff]
  %v145 = vld [vmem:[%s1 + $0x2f8] sm:$0xff]
  %v146 = vld [vmem:[%s1 + $0x300] sm:$0xff]
  %v147 = vld [vmem:[%s1 + $0x308] sm:$0xff]
  %v148 = vld [vmem:[%s1 + $0x310] sm:$0xff]
  %v149 = vld [vmem:[%s1 + $0x318] sm:$0xff]
  %v150 = vld [vmem:[%s1 + $0x320] sm:$0xff]
  %v151 = vld [vmem:[%s1 + $0x328] sm:$0xff]
  %v152 = vld [vmem:[%s1 + $0x330] sm:$0xff]
  %v153 = vld [vmem:[%s1 + $0x338] sm:$0xff]
  %v154 = vld [vmem:[%s1 + $0x340] sm:$0xff]
  %v155 = vld [vmem:[%s1 + $0x348] sm:$0xff]
  %v156 = vld [vmem:[%s1 + $0x350] sm:$0xff]
  %v157 = vld [vmem:[%s1 + $0x358] sm:$0xff]
  %v158 = vld [vmem:[%s1 + $0x360] sm:$0xff]
  %v159 = vld [vmem:[%s1 + $0x368] sm:$0xff]
  %v160 = vld [vmem:[%s1 + $0x370] sm:$0xff]
  %v161 = vld [vmem:[%s1 + $0x378] sm:$0xff]
  %v162 = vld [vmem:[%s1 + $0x380] sm:$0xff]
  %v163 = vld [vmem:[%s1 + $0x388] sm:$0xff]
  %v164 = vld [vmem:[%s1 + $0x390] sm:$0xff]
  %v165 = vld [vmem:[%s1 + $0x398] sm:$0xff]
  %v166 = vld [vmem:[%s1 + $0x3a0] sm:$0xff]
  %v167 = vld [vmem:[%s1 + $0x3a8] sm:$0xff]
  %v168 = vld [vmem:[%s1 + $0x3b0] sm:$0xff]
  %v169 = vld [vmem:[%s1 + $0x3b8] sm:$0xff]
  %v170 = vld [vmem:[%s1 + $0x3c0] sm:$0xff]
  %v171 = vld [vmem:[%s1 + $0x3c8] sm:$0xff]
  %v172 = vld [vmem:[%s1 + $0x3d0] sm:$0xff]
  %v173 = vld [vmem:[%s1 + $0x3d8] sm:$0xff]
  %v174 = vld [vmem:[%s1 + $0x3e0] sm:$0xff]
  %v175 = vld [vmem:[%s1 + $0x3e8] sm:$0xff]
  %v176 = vld [vmem:[%s1 + $0x3f0] sm:$0xff]
  %v177 = vld [vmem:[%s1 + $0x3f8] sm:$0xff]
  %v178 = vld [vmem:[%s1 + $0x400] sm:$0xff]
  %v179 = vld [vmem:[%s1 + $0x408] sm:$0xff]
  %v180 = vld [vmem:[%s1 + $0x410] sm:$0xff]
  %v181 = vld [vmem:[%s1 + $0x418] sm:$0xff]
  %v182 = vld [vmem:[%s1 + $0x420] sm:$0xff]
  %v183 = vld [vmem:[%s1 + $0x428] sm:$0xff]
  %v184 = vld [vmem:[%s1 + $0x430] sm:$0xff]
  %v185 = vld [vmem:[%s1 + $0x438] sm:$0xff]
  %v186 = vld [vmem:[%s1 + $0x440] sm:$0xff]
  %v187 = vld [vmem:[%s1 + $0x448] sm:$0xff]
  %v188 = vld [vmem:[%s1 + $0x450] sm:$0xff]
  %v189 = vld [vmem:[%s1 + $0x458] sm:$0xff]
  %v190 = vld [vmem:[%s1 + $0x460] sm:$0xff]
  %v191 = vld [vmem:[%s1 + $0x468] sm:$0xff]
  %v192 = vld [vmem:[%s1 + $0x470] sm:$0xff]
  %v193 = vld [vmem:[%s1 + $0x478] sm:$0xff]
  %v194 = vld [vmem:[%s1 + $0x480] sm:$0xff]
  %v195 = vld [vmem:[%s1 + $0x488] sm:$0xff]
  %v196 = vld [vmem:[%s1 + $0x490] sm:$0xff]
  %v197 = vld [vmem:[%s1 + $0x498] sm:$0xff]
  %v198 = vld [vmem:[%s1 + $0x4a0] sm:$0xff]
  %v199 = vld [vmem:[%s1 + $0x4a8] sm:$0xff]
  %v200 = vld [vmem:[%s1 + $0x4b0] sm:$0xff]
  %v201 = vld [vmem:[%s1 + $0x4b8] sm:$0xff]
  %v202 = vld [vmem:[%s1 + $0x4c0] sm:$0xff]
  %v203 = vld [vmem:[%s1 + $0x4c8] sm:$0xff]
  %v204 = vld [vmem:[%s1 + $0x4d0] sm:$0xff]
  %v205 = vld [vmem:[%s1 + $0x4d8] sm:$0xff]
  %v206 = vld [vmem:[%s1 + $0x4e0] sm:$0xff]
  %v207 = vld [vmem:[%s1 + $0x4e8] sm:$0xff]
  %v208 = vld [vmem:[%s1 + $0x4f0] sm:$0xff]
  %v209 = vld [vmem:[%s1 + $0x4f8] sm:$0xff]
  %v210 = vld [vmem:[%s1 + $0x500] sm:$0xff]
  %v211 = vld [vmem:[%s1 + $0x508] sm:$0xff]
  %v212 = vld [vmem:[%s1 + $0x510] sm:$0xff]
  %v213 = vld [vmem:[%s1 + $0x518] sm:$0xff]
  %v214 = vld [vmem:[%s1 + $0x520] sm:$0xff]
  %v215 = vld [vmem:[%s1 + $0x528] sm:$0xff]
  %v216 = vld [vmem:[%s1 + $0x530] sm:$0xff]
  %v217 = vld [vmem:[%s1 + $0x538] sm:$0xff]
  %v218 = vld [vmem:[%s1 + $0x540] sm:$0xff]
  %v219 = vld [vmem:[%s1 + $0x548] sm:$0xff]
  %v220 = vld [vmem:[%s1 + $0x550] sm:$0xff]
  %v221 = vld [vmem:[%s1 + $0x558] sm:$0xff]
  %v222 = vld [vmem:[%s1 + $0x560] sm:$0xff]
  %v223 = vld [vmem:[%s1 + $0x568] sm:$0xff]
  %v224 = vld [vmem:[%s1 + $0x570] sm:$0xff]
  %v225 = vld [vmem:[%s1 + $0x578] sm:$0xff]
  %v226 = vld [vmem:[%s1 + $0x580] sm:$0xff]
  %v227 = vld [vmem:[%s1 + $0x588] sm:$0xff]
  %v228 = vld [vmem:[%s1 + $0x590] sm:$0xff]
  %v229 = vld [vmem:[%s1 + $0x598] sm:$0xff]
  %v230 = vld [vmem:[%s1 + $0x5a0] sm:$0xff]
  %v231 = vld [vmem:[%s1 + $0x5a8] sm:$0xff]
  %v232 = vld [vmem:[%s1 + $0x5b0] sm:$0xff]
  %v233 = vld [vmem:[%s1 + $0x5b8] sm:$0xff]
  %v234 = vld [vmem:[%s1 + $0x5c0] sm:$0xff]
  %v235 = vld [vmem:[%s1 + $0x5c8] sm:$0xff]
  %v236 = vld [vmem:[%s1 + $0x5d0] sm:$0xff]
  %v237 = vld [vmem:[%s1 + $0x5d8] sm:$0xff]
  %v238 = vld [vmem:[%s1 + $0x5e0] sm:$0xff]
  %v239 = vld [vmem:[%s1 + $0x5e8] sm:$0xff]
  %v240 = vld [vmem:[%s1 + $0x5f0] sm:$0xff]
  %v241 = vld [vmem:[%s1 + $0x5f8] sm:$0xff]
  %v242 = vld [vmem:[%s1 + $0x600] sm:$0xff]
  %v243 = vld [vmem:[%s1 + $0x608] sm:$0xff]
  %v244 = vld [vmem:[%s1 + $0x610] sm:$0xff]
  %v245 = vld [vmem:[%s1 + $0x618] sm:$0xff]
  %v246 = vld [vmem:[%s1 + $0x620] sm:$0xff]
  %v247 = vld [vmem:[%s1 + $0x628] sm:$0xff]
  %v248 = vld [vmem:[%s1 + $0x630] sm:$0xff]
  %v249 = vld [vmem:[%s1 + $0x638] sm:$0xff]
  %v250 = vld [vmem:[%s1 + $0x640] sm:$0xff]
  %v251 = vld [vmem:[%s1 + $0x648] sm:$0xff]
  %v252 = vld [vmem:[%s1 + $0x650] sm:$0xff]
  %v253 = vld [vmem:[%s1 + $0x658] sm:$0xff]
  %v254 = vld [vmem:[%s1 + $0x660] sm:$0xff]
  %v255 = vld [vmem:[%s1 + $0x668] sm:$0xff]
  %v256 = vld [vmem:[%s1 + $0x670] sm:$0xff]
  %v257 = vld [vmem:[%s1 + $0x678] sm:$0xff]
  %v258 = vld [vmem:[%s1 + $0x680] sm:$0xff]
  %v259 = vld [vmem:[%s1 + $0x688] sm:$0xff]
  %v260 = vld [vmem:[%s1 + $0x690] sm:$0xff]
  %v261 = vld [vmem:[%s1 + $0x698] sm:$0xff]
  %v262 = vld [vmem:[%s1 + $0x6a0] sm:$0xff]
  %v263 = vld [vmem:[%s1 + $0x6a8] sm:$0xff]
  %v264 = vld [vmem:[%s1 + $0x6b0] sm:$0xff]
  %v265 = vld [vmem:[%s1 + $0x6b8] sm:$0xff]
  %v266 = vld [vmem:[%s1 + $0x6c0] sm:$0xff]
  %v267 = vld [vmem:[%s1 + $0x6c8] sm:$0xff]
  %v268 = vld [vmem:[%s1 + $0x6d0] sm:$0xff]
  %v269 = vld [vmem:[%s1 + $0x6d8] sm:$0xff]
  %v270 = vld [vmem:[%s1 + $0x6e0] sm:$0xff]
  %v271 = vld [vmem:[%s1 + $0x6e8] sm:$0xff]
  %v272 = vld [vmem:[%s1 + $0x6f0] sm:$0xff]
  %v273 = vld [vmem:[%s1 + $0x6f8] sm:$0xff]
  %v274 = vld [vmem:[%s1 + $0x700] sm:$0xff]
  %v275 = vld [vmem:[%s1 + $0x708] sm:$0xff]
  %v276 = vld [vmem:[%s1 + $0x710] sm:$0xff]
  %v277 = vld [vmem:[%s1 + $0x718] sm:$0xff]
  %v278 = vld [vmem:[%s1 + $0x720] sm:$0xff]
  %v279 = vld [vmem:[%s1 + $0x728] sm:$0xff]
  %v280 = vld [vmem:[%s1 + $0x730] sm:$0xff]
  %v281 = vld [vmem:[%s1 + $0x738] sm:$0xff]
  %v282 = vld [vmem:[%s1 + $0x740] sm:$0xff]
  %v283 = vld [vmem:[%s1 + $0x748] sm:$0xff]
  %v284 = vld [vmem:[%s1 + $0x750] sm:$0xff]
  %v285 = vld [vmem:[%s1 + $0x758] sm:$0xff]
  %v286 = vld [vmem:[%s1 + $0x760] sm:$0xff]
  %v287 = vld [vmem:[%s1 + $0x768] sm:$0xff]
  %v288 = vld [vmem:[%s1 + $0x770] sm:$0xff]
  %v289 = vld [vmem:[%s1 + $0x778] sm:$0xff]
  %v290 = vld [vmem:[%s1 + $0x780] sm:$0xff]
  %v291 = vld [vmem:[%s1 + $0x788] sm:$0xff]
  %v292 = vld [vmem:[%s1 + $0x790] sm:$0xff]
  %v293 = vld [vmem:[%s1 + $0x798] sm:$0xff]
  %v294 = vld [vmem:[%s1 + $0x7a0] sm:$0xff]
  %v295 = vld [vmem:[%s1 + $0x7a8] sm:$0xff]
  %v296 = vld [vmem:[%s1 + $0x7b0] sm:$0xff]
  %v297 = vld [vmem:[%s1 + $0x7b8] sm:$0xff]
  %v298 = vld [vmem:[%s1 + $0x7c0] sm:$0xff]
  %v299 = vld [vmem:[%s1 + $0x7c8] sm:$0xff]
  %v300 = vld [vmem:[%s1 + $0x7d0] sm:$0xff]
  %v301 = vld [vmem:[%s1 + $0x7d8] sm:$0xff]
  %v302 = vld [vmem:[%s1 + $0x7e0] sm:$0xff]
  %v303 = vld [vmem:[%s1 + $0x7e8] sm:$0xff]
  %v304 = vld [vmem:[%s1 + $0x7f0] sm:$0xff]
  %v305 = vld [vmem:[%s1 + $0x7f8] sm:$0xff]
  %v306 = vld [vmem:[%s1 + $0x800] sm:$0xff]
  %v307 = vld [vmem:[%s1 + $0x808] sm:$0xff]
  %v308 = vld [vmem:[%s1 + $0x810] sm:$0xff]
  %v309 = vld [vmem:[%s1 + $0x818] sm:$0xff]
  %v310 = vld [vmem:[%s1 + $0x820] sm:$0xff]
  %v311 = vld [vmem:[%s1 + $0x828] sm:$0xff]
  %v312 = vld [vmem:[%s1 + $0x830] sm:$0xff]
  %v313 = vld [vmem:[%s1 + $0x838] sm:$0xff]
  %v314 = vld [vmem:[%s1 + $0x840] sm:$0xff]
  %v315 = vld [vmem:[%s1 + $0x848] sm:$0xff]
  %v316 = vld [vmem:[%s1 + $0x850] sm:$0xff]
  %v317 = vld [vmem:[%s1 + $0x858] sm:$0xff]
  %v318 = vld [vmem:[%s1 + $0x860] sm:$0xff]
  %v319 = vld [vmem:[%s1 + $0x868] sm:$0xff]
  %v320 = vld [vmem:[%s1 + $0x870] sm:$0xff]
  %v321 = vld [vmem:[%s1 + $0x878] sm:$0xff]
  %v322 = vld [vmem:[%s1 + $0x880] sm:$0xff]
  %v323 = vld [vmem:[%s1 + $0x888] sm:$0xff]
  %v324 = vld [vmem:[%s1 + $0x890] sm:$0xff]
  %v325 = vld [vmem:[%s1 + $0x898] sm:$0xff]
  %v326 = vld [vmem:[%s1 + $0x8a0] sm:$0xff]
  %v327 = vld [vmem:[%s1 + $0x8a8] sm:$0xff]
  %v328 = vld [vmem:[%s1 + $0x8b0] sm:$0xff]
  %v329 = vld [vmem:[%s1 + $0x8b8] sm:$0xff]
  %v330 = vld [vmem:[%s1 + $0x8c0] sm:$0xff]
  %v331 = vld [vmem:[%s1 + $0x8c8] sm:$0xff]
  %v332 = vld [vmem:[%s1 + $0x8d0] sm:$0xff]
  %v333 = vld [vmem:[%s1 + $0x8d8] sm:$0xff]
  %v334 = vld [vmem:[%s1 + $0x8e0] sm:$0xff]
  %v335 = vld [vmem:[%s1 + $0x8e8] sm:$0xff]
  %v336 = vld [vmem:[%s1 + $0x8f0] sm:$0xff]
  %v337 = vld [vmem:[%s1 + $0x8f8] sm:$0xff]
  %v338 = vld [vmem:[%s1 + $0x900] sm:$0xff]
  %v339 = vld [vmem:[%s1 + $0x908] sm:$0xff]
  %v340 = vld [vmem:[%s1 + $0x910] sm:$0xff]
  %v341 = vld [vmem:[%s1 + $0x918] sm:$0xff]
  %v342 = vld [vmem:[%s1 + $0x920] sm:$0xff]
  %v343 = vld [vmem:[%s1 + $0x928] sm:$0xff]
  %v344 = vld [vmem:[%s1 + $0x930] sm:$0xff]
  %v345 = vld [vmem:[%s1 + $0x938] sm:$0xff]
  %v346 = vld [vmem:[%s1 + $0x940] sm:$0xff]
  %v347 = vld [vmem:[%s1 + $0x948] sm:$0xff]
  %v348 = vld [vmem:[%s1 + $0x950] sm:$0xff]
  %v349 = vld [vmem:[%s1 + $0x958] sm:$0xff]
  %v350 = vld [vmem:[%s1 + $0x960] sm:$0xff]
  %v351 = vld [vmem:[%s1 + $0x968] sm:$0xff]
  %v352 = vld [vmem:[%s1 + $0x970] sm:$0xff]
  %v353 = vld [vmem:[%s1 + $0x978] sm:$0xff]
  %v354 = vld [vmem:[%s1 + $0x980] sm:$0xff]
  %v355 = vld [vmem:[%s1 + $0x988] sm:$0xff]
  %v356 = vld [vmem:[%s1 + $0x990] sm:$0xff]
  %v357 = vld [vmem:[%s1 + $0x998] sm:$0xff]
  %v358 = vld [vmem:[%s1 + $0x9a0] sm:$0xff]
  %v359 = vld [vmem:[%s1 + $0x9a8] sm:$0xff]
  %v360 = vld [vmem:[%s1 + $0x9b0] sm:$0xff]
  %v361 = vld [vmem:[%s1 + $0x9b8] sm:$0xff]
  %v362 = vld [vmem:[%s1 + $0x9c0] sm:$0xff]
  %v363 = vld [vmem:[%s1 + $0x9c8] sm:$0xff]
  %v364 = vld [vmem:[%s1 + $0x9d0] sm:$0xff]
  %v365 = vld [vmem:[%s1 + $0x9d8] sm:$0xff]
  %v366 = vld [vmem:[%s1 + $0x9e0] sm:$0xff]
  %v367 = vld [vmem:[%s1 + $0x9e8] sm:$0xff]
  %v368 = vld [vmem:[%s1 + $0x9f0] sm:$0xff]
  %v369 = vld [vmem:[%s1 + $0x9f8] sm:$0xff]
  %v370 = vld [vmem:[%s1 + $0xa00] sm:$0xff]
  %v371 = vld [vmem:[%s1 + $0xa08] sm:$0xff]
  %v372 = vld [vmem:[%s1 + $0xa10] sm:$0xff]
  %v373 = vld [vmem:[%s1 + $0xa18] sm:$0xff]
  %v374 = vld [vmem:[%s1 + $0xa20] sm:$0xff]
  %v375 = vld [vmem:[%s1 + $0xa28] sm:$0xff]
  %v376 = vld [vmem:[%s1 + $0xa30] sm:$0xff]
  %v377 = vld [vmem:[%s1 + $0xa38] sm:$0xff]
  %v378 = vld [vmem:[%s1 + $0xa40] sm:$0xff]
  %v379 = vld [vmem:[%s1 + $0xa48] sm:$0xff]
  %v380 = vld [vmem:[%s1 + $0xa50] sm:$0xff]
  %v381 = vld [vmem:[%s1 + $0xa58] sm:$0xff]
  %v382 = vld [vmem:[%s1 + $0xa60] sm:$0xff]
  %v383 = vld [vmem:[%s1 + $0xa68] sm:$0xff]
  %v384 = vld [vmem:[%s1 + $0xa70] sm:$0xff]
  %v385 = vld [vmem:[%s1 + $0xa78] sm:$0xff]
  %v386 = vld [vmem:[%s1 + $0xa80] sm:$0xff]
  %v387 = vld [vmem:[%s1 + $0xa88] sm:$0xff]
  %v388 = vld [vmem:[%s1 + $0xa90] sm:$0xff]
  %v389 = vld [vmem:[%s1 + $0xa98] sm:$0xff]
  %v390 = vld [vmem:[%s1 + $0xaa0] sm:$0xff]
  %v391 = vld [vmem:[%s1 + $0xaa8] sm:$0xff]
  %v392 = vld [vmem:[%s1 + $0xab0] sm:$0xff]
  %v393 = vld [vmem:[%s1 + $0xab8] sm:$0xff]
  %v394 = vld [vmem:[%s1 + $0xac0] sm:$0xff]
  %v395 = vld [vmem:[%s1 + $0xac8] sm:$0xff]
  %v396 = vld [vmem:[%s1 + $0xad0] sm:$0xff]
  %v397 = vld [vmem:[%s1 + $0xad8] sm:$0xff]
  %v398 = vld [vmem:[%s1 + $0xae0] sm:$0xff]
  %v399 = vld [vmem:[%s1 + $0xae8] sm:$0xff]
  %v400 = vld [vmem:[%s1 + $0xaf0] sm:$0xff]
  %v401 = vld [vmem:[%s1 + $0xaf8] sm:$0xff]
  %v402 = vld [vmem:[%s1 + $0xb00] sm:$0xff]
  %v403 = vld [vmem:[%s1 + $0xb08] sm:$0xff]
  %v404 = vld [vmem:[%s1 + $0xb10] sm:$0xff]
  %v405 = vld [vmem:[%s1 + $0xb18] sm:$0xff]
  %v406 = vld [vmem:[%s1 + $0xb20] sm:$0xff]
  %v407 = vld [vmem:[%s1 + $0xb28] sm:$0xff]
  %v408 = vld [vmem:[%s1 + $0xb30] sm:$0xff]
  %v409 = vld [vmem:[%s1 + $0xb38] sm:$0xff]
  %v410 = vld [vmem:[%s1 + $0xb40] sm:$0xff]
  %v411 = vld [vmem:[%s1 + $0xb48] sm:$0xff]
  %v412 = vld [vmem:[%s1 + $0xb50] sm:$0xff]
  %v413 = vld [vmem:[%s1 + $0xb58] sm:$0xff]
  %v414 = vld [vmem:[%s1 + $0xb60] sm:$0xff]
  %v415 = vld [vmem:[%s1 + $0xb68] sm:$0xff]
  %v416 = vld [vmem:[%s1 + $0xb70] sm:$0xff]
  %v417 = vld [vmem:[%s1 + $0xb78] sm:$0xff]
  %v418 = vld [vmem:[%s1 + $0xb80] sm:$0xff]
  %v419 = vld [vmem:[%s1 + $0xb88] sm:$0xff]
  %v420 = vld [vmem:[%s1 + $0xb90] sm:$0xff]
  %v421 = vld [vmem:[%s1 + $0xb98] sm:$0xff]
  %v422 = vld [vmem:[%s1 + $0xba0] sm:$0xff]
  %v423 = vld [vmem:[%s1 + $0xba8] sm:$0xff]
  %v424 = vld [vmem:[%s1 + $0xbb0] sm:$0xff]
  %v425 = vld [vmem:[%s1 + $0xbb8] sm:$0xff]
  %v426 = vld [vmem:[%s1 + $0xbc0] sm:$0xff]
  %v427 = vld [vmem:[%s1 + $0xbc8] sm:$0xff]
  %v428 = vld [vmem:[%s1 + $0xbd0] sm:$0xff]
  %v429 = vld [vmem:[%s1 + $0xbd8] sm:$0xff]
  %v430 = vld [vmem:[%s1 + $0xbe0] sm:$0xff]
  %v431 = vld [vmem:[%s1 + $0xbe8] sm:$0xff]
  %v432 = vld [vmem:[%s1 + $0xbf0] sm:$0xff]
  %v433 = vld [vmem:[%s1 + $0xbf8] sm:$0xff]
  %v434 = vld [vmem:[%s1 + $0xc00] sm:$0xff]
  %v435 = vld [vmem:[%s1 + $0xc08] sm:$0xff]
  %v436 = vld [vmem:[%s1 + $0xc10] sm:$0xff]
  %v437 = vld [vmem:[%s1 + $0xc18] sm:$0xff]
  %v438 = vld [vmem:[%s1 + $0xc20] sm:$0xff]
  %v439 = vld [vmem:[%s1 + $0xc28] sm:$0xff]
  %v440 = vld [vmem:[%s1 + $0xc30] sm:$0xff]
  %v441 = vld [vmem:[%s1 + $0xc38] sm:$0xff]
  %v442 = vld [vmem:[%s1 + $0xc40] sm:$0xff]
  %v443 = vld [vmem:[%s1 + $0xc48] sm:$0xff]
  %v444 = vld [vmem:[%s1 + $0xc50] sm:$0xff]
  %v445 = vld [vmem:[%s1 + $0xc58] sm:$0xff]
  %v446 = vld [vmem:[%s1 + $0xc60] sm:$0xff]
  %v447 = vld [vmem:[%s1 + $0xc68] sm:$0xff]
  %v448 = vld [vmem:[%s1 + $0xc70] sm:$0xff]
  %v449 = vld [vmem:[%s1 + $0xc78] sm:$0xff]
  %v450 = vld [vmem:[%s1 + $0xc80] sm:$0xff]
  %v451 = vld [vmem:[%s1 + $0xc88] sm:$0xff]
  %v452 = vld [vmem:[%s1 + $0xc90] sm:$0xff]
  %v453 = vld [vmem:[%s1 + $0xc98] sm:$0xff]
  %v454 = vld [vmem:[%s1 + $0xca0] sm:$0xff]
  %v455 = vld [vmem:[%s1 + $0xca8] sm:$0xff]
  %v456 = vld [vmem:[%s1 + $0xcb0] sm:$0xff]
  %v457 = vld [vmem:[%s1 + $0xcb8] sm:$0xff]
  %v458 = vld [vmem:[%s1 + $0xcc0] sm:$0xff]
  %v459 = vld [vmem:[%s1 + $0xcc8] sm:$0xff]
  %v460 = vld [vmem:[%s1 + $0xcd0] sm:$0xff]
  %v461 = vld [vmem:[%s1 + $0xcd8] sm:$0xff]
  %v462 = vld [vmem:[%s1 + $0xce0] sm:$0xff]
  %v463 = vld [vmem:[%s1 + $0xce8] sm:$0xff]
  %v464 = vld [vmem:[%s1 + $0xcf0] sm:$0xff]
  %v465 = vld [vmem:[%s1 + $0xcf8] sm:$0xff]
  %v466 = vld [vmem:[%s1 + $0xd00] sm:$0xff]
  %v467 = vld [vmem:[%s1 + $0xd08] sm:$0xff]
  %v468 = vld [vmem:[%s1 + $0xd10] sm:$0xff]
  %v469 = vld [vmem:[%s1 + $0xd18] sm:$0xff]
  %v470 = vld [vmem:[%s1 + $0xd20] sm:$0xff]
  %v471 = vld [vmem:[%s1 + $0xd28] sm:$0xff]
  %v472 = vld [vmem:[%s1 + $0xd30] sm:$0xff]
  %v473 = vld [vmem:[%s1 + $0xd38] sm:$0xff]
  %v474 = vld [vmem:[%s1 + $0xd40] sm:$0xff]
  %v475 = vld [vmem:[%s1 + $0xd48] sm:$0xff]
  %v476 = vld [vmem:[%s1 + $0xd50] sm:$0xff]
  %v477 = vld [vmem:[%s1 + $0xd58] sm:$0xff]
  %v478 = vld [vmem:[%s1 + $0xd60] sm:$0xff]
  %v479 = vld [vmem:[%s1 + $0xd68] sm:$0xff]
  %v480 = vld [vmem:[%s1 + $0xd70] sm:$0xff]
  %v481 = vld [vmem:[%s1 + $0xd78] sm:$0xff]
  %v482 = vld [vmem:[%s1 + $0xd80] sm:$0xff]
  %v483 = vld [vmem:[%s1 + $0xd88] sm:$0xff]
  %v484 = vld [vmem:[%s1 + $0xd90] sm:$0xff]
  %v485 = vld [vmem:[%s1 + $0xd98] sm:$0xff]
  %v486 = vld [vmem:[%s1 + $0xda0] sm:$0xff]
  %v487 = vld [vmem:[%s1 + $0xda8] sm:$0xff]
  %v488 = vld [vmem:[%s1 + $0xdb0] sm:$0xff]
  %v489 = vld [vmem:[%s1 + $0xdb8] sm:$0xff]
  %v490 = vld [vmem:[%s1 + $0xdc0] sm:$0xff]
  %v491 = vld [vmem:[%s1 + $0xdc8] sm:$0xff]
  %v492 = vld [vmem:[%s1 + $0xdd0] sm:$0xff]
  %v493 = vld [vmem:[%s1 + $0xdd8] sm:$0xff]
  %v494 = vld [vmem:[%s1 + $0xde0] sm:$0xff]
  %v495 = vld [vmem:[%s1 + $0xde8] sm:$0xff]
  %v496 = vld [vmem:[%s1 + $0xdf0] sm:$0xff]
  %v497 = vld [vmem:[%s1 + $0xdf8] sm:$0xff]
  %v498 = vld [vmem:[%s1 + $0xe00] sm:$0xff]
  %v499 = vld [vmem:[%s1 + $0xe08] sm:$0xff]
  %v500 = vld [vmem:[%s1 + $0xe10] sm:$0xff]
  %v501 = vld [vmem:[%s1 + $0xe18] sm:$0xff]
  %v502 = vld [vmem:[%s1 + $0xe20] sm:$0xff]
  %v503 = vld [vmem:[%s1 + $0xe28] sm:$0xff]
  %v504 = vld [vmem:[%s1 + $0xe30] sm:$0xff]
  %v505 = vld [vmem:[%s1 + $0xe38] sm:$0xff]
  %v506 = vld [vmem:[%s1 + $0xe40] sm:$0xff]
  %v507 = vld [vmem:[%s1 + $0xe48] sm:$0xff]
  %v508 = vld [vmem:[%s1 + $0xe50] sm:$0xff]
  %v509 = vld [vmem:[%s1 + $0xe58] sm:$0xff]
  %v510 = vld [vmem:[%s1 + $0xe60] sm:$0xff]
  %v511 = vld [vmem:[%s1 + $0xe68] sm:$0xff]
  %v512 = vld [vmem:[%s1 + $0xe70] sm:$0xff]
  %v513 = vld [vmem:[%s1 + $0xe78] sm:$0xff]
  %v514 = vld [vmem:[%s1 + $0xe80] sm:$0xff]
  %v515 = vld [vmem:[%s1 + $0xe88] sm:$0xff]
  %v516 = vld [vmem:[%s1 + $0xe90] sm:$0xff]
  %v517 = vld [vmem:[%s1 + $0xe98] sm:$0xff]
  %v518 = vld [vmem:[%s1 + $0xea0] sm:$0xff]
  %v519 = vld [vmem:[%s1 + $0xea8] sm:$0xff]
  %v520 = vld [vmem:[%s1 + $0xeb0] sm:$0xff]
  %v521 = vld [vmem:[%s1 + $0xeb8] sm:$0xff]
  %v522 = vld [vmem:[%s1 + $0xec0] sm:$0xff]
  %v523 = vld [vmem:[%s1 + $0xec8] sm:$0xff]
  %v524 = vld [vmem:[%s1 + $0xed0] sm:$0xff]
  %v525 = vld [vmem:[%s1 + $0xed8] sm:$0xff]
  %v526 = vld [vmem:[%s1 + $0xee0] sm:$0xff]
  %v527 = vld [vmem:[%s1 + $0xee8] sm:$0xff]
  %v528 = vld [vmem:[%s1 + $0xef0] sm:$0xff]
  %v529 = vld [vmem:[%s1 + $0xef8] sm:$0xff]
  %v530 = vld [vmem:[%s1 + $0xf00] sm:$0xff]
  %v531 = vld [vmem:[%s1 + $0xf08] sm:$0xff]
  %v532 = vld [vmem:[%s1 + $0xf10] sm:$0xff]
  %v533 = vld [vmem:[%s1 + $0xf18] sm:$0xff]
  %v534 = vld [vmem:[%s1 + $0xf20] sm:$0xff]
  %v535 = vld [vmem:[%s1 + $0xf28] sm:$0xff]
  %v536 = vld [vmem:[%s1 + $0xf30] sm:$0xff]
  %v537 = vld [vmem:[%s1 + $0xf38] sm:$0xff]
  %v538 = vld [vmem:[%s1 + $0xf40] sm:$0xff]
  %v539 = vld [vmem:[%s1 + $0xf48] sm:$0xff]
  %v540 = vld [vmem:[%s1 + $0xf50] sm:$0xff]
  %v541 = vld [vmem:[%s1 + $0xf58] sm:$0xff]
  %v542 = vld [vmem:[%s1 + $0xf60] sm:$0xff]
  %v543 = vld [vmem:[%s1 + $0xf68] sm:$0xff]
  %v544 = vld [vmem:[%s1 + $0xf70] sm:$0xff]
  %v545 = vld [vmem:[%s1 + $0xf78] sm:$0xff]
  %v546 = vld [vmem:[%s1 + $0xf80] sm:$0xff]
  %v547 = vld [vmem:[%s1 + $0xf88] sm:$0xff]
  %v548 = vld [vmem:[%s1 + $0xf90] sm:$0xff]
  %v549 = vld [vmem:[%s1 + $0xf98] sm:$0xff]
  %v550 = vld [vmem:[%s1 + $0xfa0] sm:$0xff]
  %v551 = vld [vmem:[%s1 + $0xfa8] sm:$0xff]
  %v552 = vld [vmem:[%s1 + $0xfb0] sm:$0xff]
  %v553 = vld [vmem:[%s1 + $0xfb8] sm:$0xff]
  %v554 = vld [vmem:[%s1 + $0xfc0] sm:$0xff]
  %v555 = vld [vmem:[%s1 + $0xfc8] sm:$0xff]
  %v556 = vld [vmem:[%s1 + $0xfd0] sm:$0xff]
  %v557 = vld [vmem:[%s1 + $0xfd8] sm:$0xff]
  %v558 = vld [vmem:[%s1 + $0xfe0] sm:$0xff]
  %v559 = vld [vmem:[%s1 + $0xfe8] sm:$0xff]
  %v560 = vld [vmem:[%s1 + $0xff0] sm:$0xff]
  %v561 = vld [vmem:[%s1 + $0xff8] sm:$0xff]
  %v562 = vld [vmem:[%s1 + $0x1000] sm:$0xff]
  %v563 = vld [vmem:[%s1 + $0x1008] sm:$0xff]
  %v564 = vld [vmem:[%s1 + $0x1010] sm:$0xff]
  %v565 = vld [vmem:[%s1 + $0x1018] sm:$0xff]
  %v566 = vld [vmem:[%s1 + $0x1020] sm:$0xff]
  %v567 = vld [vmem:[%s1 + $0x1028] sm:$0xff]
  %v568 = vld [vmem:[%s1 + $0x1030] sm:$0xff]
  %v569 = vld [vmem:[%s1 + $0x1038] sm:$0xff]
  %v570 = vld [vmem:[%s1 + $0x1040] sm:$0xff]
  %v571 = vld [vmem:[%s1 + $0x1048] sm:$0xff]
  %v572 = vld [vmem:[%s1 + $0x1050] sm:$0xff]
  %v573 = vld [vmem:[%s1 + $0x1058] sm:$0xff]
  %v574 = vld [vmem:[%s1 + $0x1060] sm:$0xff]
  %v575 = vld [vmem:[%s1 + $0x1068] sm:$0xff]
  %v576 = vld [vmem:[%s1 + $0x1070] sm:$0xff]
  %v577 = vld [vmem:[%s1 + $0x1078] sm:$0xff]
  %v578 = vld [vmem:[%s1 + $0x1080] sm:$0xff]
  %v579 = vld [vmem:[%s1 + $0x1088] sm:$0xff]
  %v580 = vld [vmem:[%s1 + $0x1090] sm:$0xff]
  %v581 = vld [vmem:[%s1 + $0x1098] sm:$0xff]
  %v582 = vld [vmem:[%s1 + $0x10a0] sm:$0xff]
  %v583 = vld [vmem:[%s1 + $0x10a8] sm:$0xff]
  %v584 = vld [vmem:[%s1 + $0x10b0] sm:$0xff]
  %v585 = vld [vmem:[%s1 + $0x10b8] sm:$0xff]
  %v586 = vld [vmem:[%s1 + $0x10c0] sm:$0xff]
  %v587 = vld [vmem:[%s1 + $0x10c8] sm:$0xff]
  %v588 = vld [vmem:[%s1 + $0x10d0] sm:$0xff]
  %v589 = vld [vmem:[%s1 + $0x10d8] sm:$0xff]
  %v590 = vld [vmem:[%s1 + $0x10e0] sm:$0xff]
  %v591 = vld [vmem:[%s1 + $0x10e8] sm:$0xff]
  %v592 = vld [vmem:[%s1 + $0x10f0] sm:$0xff]
  %v593 = vld [vmem:[%s1 + $0x10f8] sm:$0xff]
  %v594 = vld [vmem:[%s1 + $0x1100] sm:$0xff]
  %v595 = vld [vmem:[%s1 + $0x1108] sm:$0xff]
  %v596 = vld [vmem:[%s1 + $0x1110] sm:$0xff]
  %v597 = vld [vmem:[%s1 + $0x1118] sm:$0xff]
  %v598 = vld [vmem:[%s1 + $0x1120] sm:$0xff]
  %v599 = vld [vmem:[%s1 + $0x1128] sm:$0xff]
  %v600 = vld [vmem:[%s1 + $0x1130] sm:$0xff]
  %v601 = vld [vmem:[%s1 + $0x1138] sm:$0xff]
  %v602 = vld [vmem:[%s1 + $0x1140] sm:$0xff]
  %v603 = vld [vmem:[%s1 + $0x1148] sm:$0xff]
  %v604 = vld [vmem:[%s1 + $0x1150] sm:$0xff]
  %v605 = vld [vmem:[%s1 + $0x1158] sm:$0xff]
  %v606 = vld [vmem:[%s1 + $0x1160] sm:$0xff]
  %v607 = vld [vmem:[%s1 + $0x1168] sm:$0xff]
  %v608 = vld [vmem:[%s1 + $0x1170] sm:$0xff]
  %v609 = vld [vmem:[%s1 + $0x1178] sm:$0xff]
  %v610 = vld [vmem:[%s1 + $0x1180] sm:$0xff]
  %v611 = vld [vmem:[%s1 + $0x1188] sm:$0xff]
  %v612 = vld [vmem:[%s1 + $0x1190] sm:$0xff]
  %v613 = vld [vmem:[%s1 + $0x1198] sm:$0xff]
  %v614 = vld [vmem:[%s1 + $0x11a0] sm:$0xff]
  %v615 = vld [vmem:[%s1 + $0x11a8] sm:$0xff]
  %v616 = vld [vmem:[%s1 + $0x11b0] sm:$0xff]
  %v617 = vld [vmem:[%s1 + $0x11b8] sm:$0xff]
  %v618 = vld [vmem:[%s1 + $0x11c0] sm:$0xff]
  %v619 = vld [vmem:[%s1 + $0x11c8] sm:$0xff]
  %v620 = vld [vmem:[%s1 + $0x11d0] sm:$0xff]
  %v621 = vld [vmem:[%s1 + $0x11d8] sm:$0xff]
  %v622 = vld [vmem:[%s1 + $0x11e0] sm:$0xff]
  %v623 = vld [vmem:[%s1 + $0x11e8] sm:$0xff]
  %v624 = vld [vmem:[%s1 + $0x11f0] sm:$0xff]
  %v625 = vld [vmem:[%s1 + $0x11f8] sm:$0xff]
  %v626 = vld [vmem:[%s1 + $0x1200] sm:$0xff]
  %v627 = vld [vmem:[%s1 + $0x1208] sm:$0xff]
  %v628 = vld [vmem:[%s1 + $0x1210] sm:$0xff]
  %v629 = vld [vmem:[%s1 + $0x1218] sm:$0xff]
  %v630 = vld [vmem:[%s1 + $0x1220] sm:$0xff]
  %v631 = vld [vmem:[%s1 + $0x1228] sm:$0xff]
  %v632 = vld [vmem:[%s1 + $0x1230] sm:$0xff]
  %v633 = vld [vmem:[%s1 + $0x1238] sm:$0xff]
  %v634 = vld [vmem:[%s1 + $0x1240] sm:$0xff]
  %v635 = vld [vmem:[%s1 + $0x1248] sm:$0xff]
  %v636 = vld [vmem:[%s1 + $0x1250] sm:$0xff]
  %v637 = vld [vmem:[%s1 + $0x1258] sm:$0xff]
  %v638 = vld [vmem:[%s1 + $0x1260] sm:$0xff]
  %v639 = vld [vmem:[%s1 + $0x1268] sm:$0xff]
  %v640 = vld [vmem:[%s1 + $0x1270] sm:$0xff]
  %v641 = vld [vmem:[%s1 + $0x1278] sm:$0xff]
  %v642 = vld [vmem:[%s1 + $0x1280] sm:$0xff]
  %v643 = vld [vmem:[%s1 + $0x1288] sm:$0xff]
  %v644 = vld [vmem:[%s1 + $0x1290] sm:$0xff]
  %v645 = vld [vmem:[%s1 + $0x1298] sm:$0xff]
  %v646 = vld [vmem:[%s1 + $0x12a0] sm:$0xff]
  %v647 = vld [vmem:[%s1 + $0x12a8] sm:$0xff]
  %v648 = vld [vmem:[%s1 + $0x12b0] sm:$0xff]
  %v649 = vld [vmem:[%s1 + $0x12b8] sm:$0xff]
  %v650 = vld [vmem:[%s1 + $0x12c0] sm:$0xff]
  %v651 = vld [vmem:[%s1 + $0x12c8] sm:$0xff]
  %v652 = vld [vmem:[%s1 + $0x12d0] sm:$0xff]
  %v653 = vld [vmem:[%s1 + $0x12d8] sm:$0xff]
  %v654 = vld [vmem:[%s1 + $0x12e0] sm:$0xff]
  %v655 = vld [vmem:[%s1 + $0x12e8] sm:$0xff]
  %v656 = vld [vmem:[%s1 + $0x12f0] sm:$0xff]
  %v657 = vld [vmem:[%s1 + $0x12f8] sm:$0xff]
  %v658 = vld [vmem:[%s1 + $0x1300] sm:$0xff]
  %v659 = vld [vmem:[%s1 + $0x1308] sm:$0xff]
  %v660 = vld [vmem:[%s1 + $0x1310] sm:$0xff]
  %v661 = vld [vmem:[%s1 + $0x1318] sm:$0xff]
  %v662 = vld [vmem:[%s1 + $0x1320] sm:$0xff]
  %v663 = vld [vmem:[%s1 + $0x1328] sm:$0xff]
  %v664 = vld [vmem:[%s1 + $0x1330] sm:$0xff]
  %v665 = vld [vmem:[%s1 + $0x1338] sm:$0xff]
  %v666 = vld [vmem:[%s1 + $0x1340] sm:$0xff]
  %v667 = vld [vmem:[%s1 + $0x1348] sm:$0xff]
  %v668 = vld [vmem:[%s1 + $0x1350] sm:$0xff]
  %v669 = vld [vmem:[%s1 + $0x1358] sm:$0xff]
  %v670 = vld [vmem:[%s1 + $0x1360] sm:$0xff]
  %v671 = vld [vmem:[%s1 + $0x1368] sm:$0xff]
  %v672 = vld [vmem:[%s1 + $0x1370] sm:$0xff]
  %v673 = vld [vmem:[%s1 + $0x1378] sm:$0xff]
  %v674 = vld [vmem:[%s1 + $0x1380] sm:$0xff]
  %v675 = vld [vmem:[%s1 + $0x1388] sm:$0xff]
  %v676 = vld [vmem:[%s1 + $0x1390] sm:$0xff]
  %v677 = vld [vmem:[%s1 + $0x1398] sm:$0xff]
  %v678 = vld [vmem:[%s1 + $0x13a0] sm:$0xff]
  %v679 = vld [vmem:[%s1 + $0x13a8] sm:$0xff]
  %v680 = vld [vmem:[%s1 + $0x13b0] sm:$0xff]
  %v681 = vld [vmem:[%s1 + $0x13b8] sm:$0xff]
  %v682 = vld [vmem:[%s1 + $0x13c0] sm:$0xff]
  %v683 = vld [vmem:[%s1 + $0x13c8] sm:$0xff]
  %v684 = vld [vmem:[%s1 + $0x13d0] sm:$0xff]
  %v685 = vld [vmem:[%s1 + $0x13d8] sm:$0xff]
  %v686 = vld [vmem:[%s1 + $0x13e0] sm:$0xff]
  %v687 = vld [vmem:[%s1 + $0x13e8] sm:$0xff]
  %v688 = vld [vmem:[%s1 + $0x13f0] sm:$0xff]
  %v689 = vld [vmem:[%s1 + $0x13f8] sm:$0xff]
  %v690 = vld [vmem:[%s1 + $0x1400] sm:$0xff]
  %v691 = vld [vmem:[%s1 + $0x1408] sm:$0xff]
  %v692 = vld [vmem:[%s1 + $0x1410] sm:$0xff]
  %v693 = vld [vmem:[%s1 + $0x1418] sm:$0xff]
  %v694 = vld [vmem:[%s1 + $0x1420] sm:$0xff]
  %v695 = vld [vmem:[%s1 + $0x1428] sm:$0xff]
  %v696 = vld [vmem:[%s1 + $0x1430] sm:$0xff]
  %v697 = vld [vmem:[%s1 + $0x1438] sm:$0xff]
  %v698 = vld [vmem:[%s1 + $0x1440] sm:$0xff]
  %v699 = vld [vmem:[%s1 + $0x1448] sm:$0xff]
  %v700 = vld [vmem:[%s1 + $0x1450] sm:$0xff]
  %v701 = vld [vmem:[%s1 + $0x1458] sm:$0xff]
  %v702 = vld [vmem:[%s1 + $0x1460] sm:$0xff]
  %v703 = vld [vmem:[%s1 + $0x1468] sm:$0xff]
  %v704 = vld [vmem:[%s1 + $0x1470] sm:$0xff]
  %v705 = vld [vmem:[%s1 + $0x1478] sm:$0xff]
  %v706 = vld [vmem:[%s1 + $0x1480] sm:$0xff]
  %v707 = vld [vmem:[%s1 + $0x1488] sm:$0xff]
  %v708 = vld [vmem:[%s1 + $0x1490] sm:$0xff]
  %v709 = vld [vmem:[%s1 + $0x1498] sm:$0xff]
  %v710 = vld [vmem:[%s1 + $0x14a0] sm:$0xff]
  %v711 = vld [vmem:[%s1 + $0x14a8] sm:$0xff]
  %v712 = vld [vmem:[%s1 + $0x14b0] sm:$0xff]
  %v713 = vld [vmem:[%s1 + $0x14b8] sm:$0xff]
  %v714 = vld [vmem:[%s1 + $0x14c0] sm:$0xff]
  %v715 = vld [vmem:[%s1 + $0x14c8] sm:$0xff]
  %v716 = vld [vmem:[%s1 + $0x14d0] sm:$0xff]
  %v717 = vld [vmem:[%s1 + $0x14d8] sm:$0xff]
  %v718 = vld [vmem:[%s1 + $0x14e0] sm:$0xff]
  %v719 = vld [vmem:[%s1 + $0x14e8] sm:$0xff]
  %v720 = vld [vmem:[%s1 + $0x14f0] sm:$0xff]
  %v721 = vld [vmem:[%s1 + $0x14f8] sm:$0xff]
  %v722 = vld [vmem:[%s1 + $0x1500] sm:$0xff]
  %v723 = vld [vmem:[%s1 + $0x1508] sm:$0xff]
  %v724 = vld [vmem:[%s1 + $0x1510] sm:$0xff]
  %v725 = vld [vmem:[%s1 + $0x1518] sm:$0xff]
  %v726 = vld [vmem:[%s1 + $0x1520] sm:$0xff]
  %v727 = vld [vmem:[%s1 + $0x1528] sm:$0xff]
  %v728 = vld [vmem:[%s1 + $0x1530] sm:$0xff]
  %v729 = vld [vmem:[%s1 + $0x1538] sm:$0xff]
  %v730 = vld [vmem:[%s1 + $0x1540] sm:$0xff]
  %v731 = vld [vmem:[%s1 + $0x1548] sm:$0xff]
  %v732 = vld [vmem:[%s1 + $0x1550] sm:$0xff]
  %v733 = vld [vmem:[%s1 + $0x1558] sm:$0xff]
  %v734 = vld [vmem:[%s1 + $0x1560] sm:$0xff]
  %v735 = vld [vmem:[%s1 + $0x1568] sm:$0xff]
  %v736 = vld [vmem:[%s1 + $0x1570] sm:$0xff]
  %v737 = vld [vmem:[%s1 + $0x1578] sm:$0xff]
  %v738 = vld [vmem:[%s1 + $0x1580] sm:$0xff]
  %v739 = vld [vmem:[%s1 + $0x1588] sm:$0xff]
  %v740 = vld [vmem:[%s1 + $0x1590] sm:$0xff]
  %v741 = vld [vmem:[%s1 + $0x1598] sm:$0xff]
  %v742 = vld [vmem:[%s1 + $0x15a0] sm:$0xff]
  %v743 = vld [vmem:[%s1 + $0x15a8] sm:$0xff]
  %v744 = vld [vmem:[%s1 + $0x15b0] sm:$0xff]
  %v745 = vld [vmem:[%s1 + $0x15b8] sm:$0xff]
  %v746 = vld [vmem:[%s1 + $0x15c0] sm:$0xff]
  %v747 = vld [vmem:[%s1 + $0x15c8] sm:$0xff]
  %v748 = vld [vmem:[%s1 + $0x15d0] sm:$0xff]
  %v749 = vld [vmem:[%s1 + $0x15d8] sm:$0xff]
  %v750 = vld [vmem:[%s1 + $0x15e0] sm:$0xff]
  %v751 = vld [vmem:[%s1 + $0x15e8] sm:$0xff]
  %v752 = vld [vmem:[%s1 + $0x15f0] sm:$0xff]
  %v753 = vld [vmem:[%s1 + $0x15f8] sm:$0xff]
  %v754 = vld [vmem:[%s1 + $0x1600] sm:$0xff]
  %v755 = vld [vmem:[%s1 + $0x1608] sm:$0xff]
  %v756 = vld [vmem:[%s1 + $0x1610] sm:$0xff]
  %v757 = vld [vmem:[%s1 + $0x1618] sm:$0xff]
  %v758 = vld [vmem:[%s1 + $0x1620] sm:$0xff]
  %v759 = vld [vmem:[%s1 + $0x1628] sm:$0xff]
  %v760 = vld [vmem:[%s1 + $0x1630] sm:$0xff]
  %v761 = vld [vmem:[%s1 + $0x1638] sm:$0xff]
  %v762 = vld [vmem:[%s1 + $0x1640] sm:$0xff]
  %v763 = vld [vmem:[%s1 + $0x1648] sm:$0xff]
  %v764 = vld [vmem:[%s1 + $0x1650] sm:$0xff]
  %v765 = vld [vmem:[%s1 + $0x1658] sm:$0xff]
  %v766 = vld [vmem:[%s1 + $0x1660] sm:$0xff]
  %v767 = vld [vmem:[%s1 + $0x1668] sm:$0xff]
  %v768 = vld [vmem:[%s1 + $0x1670] sm:$0xff]
  %v769 = vld [vmem:[%s1 + $0x1678] sm:$0xff]
  %v770 = vld [vmem:[%s1 + $0x1680] sm:$0xff]
  %v771 = vld [vmem:[%s1 + $0x1688] sm:$0xff]
  %v772 = vld [vmem:[%s1 + $0x1690] sm:$0xff]
  %v773 = vld [vmem:[%s1 + $0x1698] sm:$0xff]
  %v774 = vld [vmem:[%s1 + $0x16a0] sm:$0xff]
  %v775 = vld [vmem:[%s1 + $0x16a8] sm:$0xff]
  %v776 = vld [vmem:[%s1 + $0x16b0] sm:$0xff]
  %v777 = vld [vmem:[%s1 + $0x16b8] sm:$0xff]
  %v778 = vld [vmem:[%s1 + $0x16c0] sm:$0xff]
  %v779 = vld [vmem:[%s1 + $0x16c8] sm:$0xff]
  %v780 = vld [vmem:[%s1 + $0x16d0] sm:$0xff]
  %v781 = vld [vmem:[%s1 + $0x16d8] sm:$0xff]
  %v782 = vld [vmem:[%s1 + $0x16e0] sm:$0xff]
  %v783 = vld [vmem:[%s1 + $0x16e8] sm:$0xff]
  %v784 = vld [vmem:[%s1 + $0x16f0] sm:$0xff]
  %v785 = vld [vmem:[%s1 + $0x16f8] sm:$0xff]
  %v786 = vld [vmem:[%s1 + $0x1700] sm:$0xff]
  %v787 = vld [vmem:[%s1 + $0x1708] sm:$0xff]
  %v788 = vld [vmem:[%s1 + $0x1710] sm:$0xff]
  %v789 = vld [vmem:[%s1 + $0x1718] sm:$0xff]
  %v790 = vld [vmem:[%s1 + $0x1720] sm:$0xff]
  %v791 = vld [vmem:[%s1 + $0x1728] sm:$0xff]
  %v792 = vld [vmem:[%s1 + $0x1730] sm:$0xff]
  %v793 = vld [vmem:[%s1 + $0x1738] sm:$0xff]
  %v794 = vld [vmem:[%s1 + $0x1740] sm:$0xff]
  %v795 = vld [vmem:[%s1 + $0x1748] sm:$0xff]
  %v796 = vld [vmem:[%s1 + $0x1750] sm:$0xff]
  %v797 = vld [vmem:[%s1 + $0x1758] sm:$0xff]
  %v798 = vld [vmem:[%s1 + $0x1760] sm:$0xff]
  %v799 = vld [vmem:[%s1 + $0x1768] sm:$0xff]
  %v800 = vld [vmem:[%s1 + $0x1770] sm:$0xff]
  %v801 = vld [vmem:[%s1 + $0x1778] sm:$0xff]
  %v802 = vld [vmem:[%s1 + $0x1780] sm:$0xff]
  %v803 = vld [vmem:[%s1 + $0x1788] sm:$0xff]
  %v804 = vld [vmem:[%s1 + $0x1790] sm:$0xff]
  %v805 = vld [vmem:[%s1 + $0x1798] sm:$0xff]
  %v806 = vld [vmem:[%s1 + $0x17a0] sm:$0xff]
  %v807 = vld [vmem:[%s1 + $0x17a8] sm:$0xff]
  %v808 = vld [vmem:[%s1 + $0x17b0] sm:$0xff]
  %v809 = vld [vmem:[%s1 + $0x17b8] sm:$0xff]
  %v810 = vld [vmem:[%s1 + $0x17c0] sm:$0xff]
  %v811 = vld [vmem:[%s1 + $0x17c8] sm:$0xff]
  %v812 = vld [vmem:[%s1 + $0x17d0] sm:$0xff]
  %v813 = vld [vmem:[%s1 + $0x17d8] sm:$0xff]
  %v814 = vld [vmem:[%s1 + $0x17e0] sm:$0xff]
  %v815 = vld [vmem:[%s1 + $0x17e8] sm:$0xff]
  %v816 = vld [vmem:[%s1 + $0x17f0] sm:$0xff]
  %v817 = vld [vmem:[%s1 + $0x17f8] sm:$0xff]
  %v818 = vld [vmem:[%s2] sm:$0x3]
  %v820 = vlaneseq
  %v821 = vshrl.u32 %v820, 7
  %v822 = vsub.s32 0, %v821
  %v823 = vrot.slane %v818, %v822
  %v824 = vlaneseq
  %v825 = vshrl.u32 %v824, 7
  %v826 = vsub.s32 1, %v825
  %v827 = vrot.slane %v818, %v826
  %830 = vmatprep.subr.mxu0 %v81
  %831 = vmatpush1.msra.mxu0 %v80
  %832 = vmatprep.subr.mxu0 %v79
  %833 = vmatpush1.msra.mxu0 %v78
  %834 = vmatprep.subr.mxu0 %v77
  %835 = vmatpush1.msra.mxu0 %v76
  %836 = vmatprep.subr.mxu0 %v75
  %837 = vmatpush1.msra.mxu0 %v74
  %838 = vmatprep.subr.mxu0 %v73
  %839 = vmatpush1.msra.mxu0 %v72
  %840 = vmatprep.subr.mxu0 %v71
  %841 = vmatpush1.msra.mxu0 %v70
  %842 = vmatprep.subr.mxu0 %v69
  %843 = vmatpush1.msra.mxu0 %v68
  %844 = vmatprep.subr.mxu0 %v67
  %845 = vmatpush1.msra.mxu0 %v66
  %846 = vmatprep.subr.mxu0 %v65
  %847 = vmatpush1.msra.mxu0 %v64
  %848 = vmatprep.subr.mxu0 %v63
  %849 = vmatpush1.msra.mxu0 %v62
  %850 = vmatprep.subr.mxu0 %v61
  %851 = vmatpush1.msra.mxu0 %v60
  %852 = vmatprep.subr.mxu0 %v59
  %853 = vmatpush1.msra.mxu0 %v58
  %854 = vmatprep.subr.mxu0 %v57
  %855 = vmatpush1.msra.mxu0 %v56
  %856 = vmatprep.subr.mxu0 %v55
  %857 = vmatpush1.msra.mxu0 %v54
  %858 = vmatprep.subr.mxu0 %v53
  %859 = vmatpush1.msra.mxu0 %v52
  %860 = vmatprep.subr.mxu0 %v51
  %861 = vmatpush1.msra.mxu0 %v50
  %862 = vmatprep.subr.mxu0 %v113
  %863 = vmatpush2.msra.mxu0 %v112
  %864 = vmatprep.subr.mxu0 %v111
  %865 = vmatpush2.msra.mxu0 %v110
  %866 = vmatprep.subr.mxu0 %v109
  %867 = vmatpush2.msra.mxu0 %v108
  %868 = vmatprep.subr.mxu0 %v107
  %869 = vmatpush2.msra.mxu0 %v106
  %870 = vmatprep.subr.mxu0 %v105
  %871 = vmatpush2.msra.mxu0 %v104
  %872 = vmatprep.subr.mxu0 %v103
  %873 = vmatpush2.msra.mxu0 %v102
  %874 = vmatprep.subr.mxu0 %v101
  %875 = vmatpush2.msra.mxu0 %v100
  %876 = vmatprep.subr.mxu0 %v99
  %877 = vmatpush2.msra.mxu0 %v98
  %878 = vmatprep.subr.mxu0 %v97
  %879 = vmatpush2.msra.mxu0 %v96
  %880 = vmatprep.subr.mxu0 %v95
  %881 = vmatpush2.msra.mxu0 %v94
  %882 = vmatprep.subr.mxu0 %v93
  %883 = vmatpush2.msra.mxu0 %v92
  %884 = vmatprep.subr.mxu0 %v91
  %885 = vmatpush2.msra.mxu0 %v90
  %886 = vmatprep.subr.mxu0 %v89
  %887 = vmatpush2.msra.mxu0 %v88
  %888 = vmatprep.subr.mxu0 %v87
  %889 = vmatpush2.msra.mxu0 %v86
  %890 = vmatprep.subr.mxu0 %v85
  %891 = vmatpush2.msra.mxu0 %v84
  %892 = vmatprep.subr.mxu0 %v83
  %893 = vmatpush2.msra.mxu0 %v82
  %894 = vmatprep.mubr.f32.mxu0 %v27
  %895 = vmatmul.mubr.f32.gmra.mxu0 %v26
  %v896 = vpop.f32.mrf.mxu0
  %v897 = vadd.f32 %v823, %v896
  %v898 = vpop.f32.mrf.mxu0
  %v899 = vadd.f32 %v827, %v898
  %900 = vdwg.mxu0
  %901 = vmatprep.subr.mxu0 %v145
  %902 = vmatpush1.msra.mxu0 %v144
  %903 = vmatprep.subr.mxu0 %v143
  %904 = vmatpush1.msra.mxu0 %v142
  %905 = vmatprep.subr.mxu0 %v141
  %906 = vmatpush1.msra.mxu0 %v140
  %907 = vmatprep.subr.mxu0 %v139
  %908 = vmatpush1.msra.mxu0 %v138
  %909 = vmatprep.subr.mxu0 %v137
  %910 = vmatpush1.msra.mxu0 %v136
  %911 = vmatprep.subr.mxu0 %v135
  %912 = vmatpush1.msra.mxu0 %v134
  %913 = vmatprep.subr.mxu0 %v133
  %914 = vmatpush1.msra.mxu0 %v132
  %915 = vmatprep.subr.mxu0 %v131
  %916 = vmatpush1.msra.mxu0 %v130
  %917 = vmatprep.subr.mxu0 %v129
  %918 = vmatpush1.msra.mxu0 %v128
  %919 = vmatprep.subr.mxu0 %v127
  %920 = vmatpush1.msra.mxu0 %v126
  %921 = vmatprep.subr.mxu0 %v125
  %922 = vmatpush1.msra.mxu0 %v124
  %923 = vmatprep.subr.mxu0 %v123
  %924 = vmatpush1.msra.mxu0 %v122
  %925 = vmatprep.subr.mxu0 %v121
  %926 = vmatpush1.msra.mxu0 %v120
  %927 = vmatprep.subr.mxu0 %v119
  %928 = vmatpush1.msra.mxu0 %v118
  %929 = vmatprep.subr.mxu0 %v117
  %930 = vmatpush1.msra.mxu0 %v116
  %931 = vmatprep.subr.mxu0 %v115
  %932 = vmatpush1.msra.mxu0 %v114
  %933 = vmatprep.subr.mxu0 %v177
  %934 = vmatpush2.msra.mxu0 %v176
  %935 = vmatprep.subr.mxu0 %v175
  %936 = vmatpush2.msra.mxu0 %v174
  %937 = vmatprep.subr.mxu0 %v173
  %938 = vmatpush2.msra.mxu0 %v172
  %939 = vmatprep.subr.mxu0 %v171
  %940 = vmatpush2.msra.mxu0 %v170
  %941 = vmatprep.subr.mxu0 %v169
  %942 = vmatpush2.msra.mxu0 %v168
  %943 = vmatprep.subr.mxu0 %v167
  %944 = vmatpush2.msra.mxu0 %v166
  %945 = vmatprep.subr.mxu0 %v165
  %946 = vmatpush2.msra.mxu0 %v164
  %947 = vmatprep.subr.mxu0 %v163
  %948 = vmatpush2.msra.mxu0 %v162
  %949 = vmatprep.subr.mxu0 %v161
  %950 = vmatpush2.msra.mxu0 %v160
  %951 = vmatprep.subr.mxu0 %v159
  %952 = vmatpush2.msra.mxu0 %v158
  %953 = vmatprep.subr.mxu0 %v157
  %954 = vmatpush2.msra.mxu0 %v156
  %955 = vmatprep.subr.mxu0 %v155
  %956 = vmatpush2.msra.mxu0 %v154
  %957 = vmatprep.subr.mxu0 %v153
  %958 = vmatpush2.msra.mxu0 %v152
  %959 = vmatprep.subr.mxu0 %v151
  %960 = vmatpush2.msra.mxu0 %v150
  %961 = vmatprep.subr.mxu0 %v149
  %962 = vmatpush2.msra.mxu0 %v148
  %963 = vmatprep.subr.mxu0 %v147
  %964 = vmatpush2.msra.mxu0 %v146
  %965 = vmatprep.mubr.f32.mxu0 %v29
  %966 = vmatmul.mubr.f32.gmra.mxu0 %v28
  %v967 = vpop.f32.mrf.mxu0
  %v968 = vadd.f32 %v897, %v967
  %v969 = vpop.f32.mrf.mxu0
  %v970 = vadd.f32 %v899, %v969
  %971 = vdwg.mxu0
  %972 = vmatprep.subr.mxu0 %v209
  %973 = vmatpush1.msra.mxu0 %v208
  %974 = vmatprep.subr.mxu0 %v207
  %975 = vmatpush1.msra.mxu0 %v206
  %976 = vmatprep.subr.mxu0 %v205
  %977 = vmatpush1.msra.mxu0 %v204
  %978 = vmatprep.subr.mxu0 %v203
  %979 = vmatpush1.msra.mxu0 %v202
  %980 = vmatprep.subr.mxu0 %v201
  %981 = vmatpush1.msra.mxu0 %v200
  %982 = vmatprep.subr.mxu0 %v199
  %983 = vmatpush1.msra.mxu0 %v198
  %984 = vmatprep.subr.mxu0 %v197
  %985 = vmatpush1.msra.mxu0 %v196
  %986 = vmatprep.subr.mxu0 %v195
  %987 = vmatpush1.msra.mxu0 %v194
  %988 = vmatprep.subr.mxu0 %v193
  %989 = vmatpush1.msra.mxu0 %v192
  %990 = vmatprep.subr.mxu0 %v191
  %991 = vmatpush1.msra.mxu0 %v190
  %992 = vmatprep.subr.mxu0 %v189
  %993 = vmatpush1.msra.mxu0 %v188
  %994 = vmatprep.subr.mxu0 %v187
  %995 = vmatpush1.msra.mxu0 %v186
  %996 = vmatprep.subr.mxu0 %v185
  %997 = vmatpush1.msra.mxu0 %v184
  %998 = vmatprep.subr.mxu0 %v183
  %999 = vmatpush1.msra.mxu0 %v182
  %1000 = vmatprep.subr.mxu0 %v181
  %1001 = vmatpush1.msra.mxu0 %v180
  %1002 = vmatprep.subr.mxu0 %v179
  %1003 = vmatpush1.msra.mxu0 %v178
  %1004 = vmatprep.subr.mxu0 %v241
  %1005 = vmatpush2.msra.mxu0 %v240
  %1006 = vmatprep.subr.mxu0 %v239
  %1007 = vmatpush2.msra.mxu0 %v238
  %1008 = vmatprep.subr.mxu0 %v237
  %1009 = vmatpush2.msra.mxu0 %v236
  %1010 = vmatprep.subr.mxu0 %v235
  %1011 = vmatpush2.msra.mxu0 %v234
  %1012 = vmatprep.subr.mxu0 %v233
  %1013 = vmatpush2.msra.mxu0 %v232
  %1014 = vmatprep.subr.mxu0 %v231
  %1015 = vmatpush2.msra.mxu0 %v230
  %1016 = vmatprep.subr.mxu0 %v229
  %1017 = vmatpush2.msra.mxu0 %v228
  %1018 = vmatprep.subr.mxu0 %v227
  %1019 = vmatpush2.msra.mxu0 %v226
  %1020 = vmatprep.subr.mxu0 %v225
  %1021 = vmatpush2.msra.mxu0 %v224
  %1022 = vmatprep.subr.mxu0 %v223
  %1023 = vmatpush2.msra.mxu0 %v222
  %1024 = vmatprep.subr.mxu0 %v221
  %1025 = vmatpush2.msra.mxu0 %v220
  %1026 = vmatprep.subr.mxu0 %v219
  %1027 = vmatpush2.msra.mxu0 %v218
  %1028 = vmatprep.subr.mxu0 %v217
  %1029 = vmatpush2.msra.mxu0 %v216
  %1030 = vmatprep.subr.mxu0 %v215
  %1031 = vmatpush2.msra.mxu0 %v214
  %1032 = vmatprep.subr.mxu0 %v213
  %1033 = vmatpush2.msra.mxu0 %v212
  %1034 = vmatprep.subr.mxu0 %v211
  %1035 = vmatpush2.msra.mxu0 %v210
  %1036 = vmatprep.mubr.f32.mxu0 %v31
  %1037 = vmatmul.mubr.f32.gmra.mxu0 %v30
  %v1038 = vpop.f32.mrf.mxu0
  %v1039 = vadd.f32 %v968, %v1038
  %v1040 = vpop.f32.mrf.mxu0
  %v1041 = vadd.f32 %v970, %v1040
  %1042 = vdwg.mxu0
  %1043 = vmatprep.subr.mxu0 %v273
  %1044 = vmatpush1.msra.mxu0 %v272
  %1045 = vmatprep.subr.mxu0 %v271
  %1046 = vmatpush1.msra.mxu0 %v270
  %1047 = vmatprep.subr.mxu0 %v269
  %1048 = vmatpush1.msra.mxu0 %v268
  %1049 = vmatprep.subr.mxu0 %v267
  %1050 = vmatpush1.msra.mxu0 %v266
  %1051 = vmatprep.subr.mxu0 %v265
  %1052 = vmatpush1.msra.mxu0 %v264
  %1053 = vmatprep.subr.mxu0 %v263
  %1054 = vmatpush1.msra.mxu0 %v262
  %1055 = vmatprep.subr.mxu0 %v261
  %1056 = vmatpush1.msra.mxu0 %v260
  %1057 = vmatprep.subr.mxu0 %v259
  %1058 = vmatpush1.msra.mxu0 %v258
  %1059 = vmatprep.subr.mxu0 %v257
  %1060 = vmatpush1.msra.mxu0 %v256
  %1061 = vmatprep.subr.mxu0 %v255
  %1062 = vmatpush1.msra.mxu0 %v254
  %1063 = vmatprep.subr.mxu0 %v253
  %1064 = vmatpush1.msra.mxu0 %v252
  %1065 = vmatprep.subr.mxu0 %v251
  %1066 = vmatpush1.msra.mxu0 %v250
  %1067 = vmatprep.subr.mxu0 %v249
  %1068 = vmatpush1.msra.mxu0 %v248
  %1069 = vmatprep.subr.mxu0 %v247
  %1070 = vmatpush1.msra.mxu0 %v246
  %1071 = vmatprep.subr.mxu0 %v245
  %1072 = vmatpush1.msra.mxu0 %v244
  %1073 = vmatprep.subr.mxu0 %v243
  %1074 = vmatpush1.msra.mxu0 %v242
  %1075 = vmatprep.subr.mxu0 %v305
  %1076 = vmatpush2.msra.mxu0 %v304
  %1077 = vmatprep.subr.mxu0 %v303
  %1078 = vmatpush2.msra.mxu0 %v302
  %1079 = vmatprep.subr.mxu0 %v301
  %1080 = vmatpush2.msra.mxu0 %v300
  %1081 = vmatprep.subr.mxu0 %v299
  %1082 = vmatpush2.msra.mxu0 %v298
  %1083 = vmatprep.subr.mxu0 %v297
  %1084 = vmatpush2.msra.mxu0 %v296
  %1085 = vmatprep.subr.mxu0 %v295
  %1086 = vmatpush2.msra.mxu0 %v294
  %1087 = vmatprep.subr.mxu0 %v293
  %1088 = vmatpush2.msra.mxu0 %v292
  %1089 = vmatprep.subr.mxu0 %v291
  %1090 = vmatpush2.msra.mxu0 %v290
  %1091 = vmatprep.subr.mxu0 %v289
  %1092 = vmatpush2.msra.mxu0 %v288
  %1093 = vmatprep.subr.mxu0 %v287
  %1094 = vmatpush2.msra.mxu0 %v286
  %1095 = vmatprep.subr.mxu0 %v285
  %1096 = vmatpush2.msra.mxu0 %v284
  %1097 = vmatprep.subr.mxu0 %v283
  %1098 = vmatpush2.msra.mxu0 %v282
  %1099 = vmatprep.subr.mxu0 %v281
  %1100 = vmatpush2.msra.mxu0 %v280
  %1101 = vmatprep.subr.mxu0 %v279
  %1102 = vmatpush2.msra.mxu0 %v278
  %1103 = vmatprep.subr.mxu0 %v277
  %1104 = vmatpush2.msra.mxu0 %v276
  %1105 = vmatprep.subr.mxu0 %v275
  %1106 = vmatpush2.msra.mxu0 %v274
  %1107 = vmatprep.mubr.f32.mxu0 %v33
  %1108 = vmatmul.mubr.f32.gmra.mxu0 %v32
  %v1109 = vpop.f32.mrf.mxu0
  %v1110 = vadd.f32 %v1039, %v1109
  %v1111 = vpop.f32.mrf.mxu0
  %v1112 = vadd.f32 %v1041, %v1111
  %1113 = vdwg.mxu0
  %1114 = vmatprep.subr.mxu0 %v337
  %1115 = vmatpush1.msra.mxu0 %v336
  %1116 = vmatprep.subr.mxu0 %v335
  %1117 = vmatpush1.msra.mxu0 %v334
  %1118 = vmatprep.subr.mxu0 %v333
  %1119 = vmatpush1.msra.mxu0 %v332
  %1120 = vmatprep.subr.mxu0 %v331
  %1121 = vmatpush1.msra.mxu0 %v330
  %1122 = vmatprep.subr.mxu0 %v329
  %1123 = vmatpush1.msra.mxu0 %v328
  %1124 = vmatprep.subr.mxu0 %v327
  %1125 = vmatpush1.msra.mxu0 %v326
  %1126 = vmatprep.subr.mxu0 %v325
  %1127 = vmatpush1.msra.mxu0 %v324
  %1128 = vmatprep.subr.mxu0 %v323
  %1129 = vmatpush1.msra.mxu0 %v322
  %1130 = vmatprep.subr.mxu0 %v321
  %1131 = vmatpush1.msra.mxu0 %v320
  %1132 = vmatprep.subr.mxu0 %v319
  %1133 = vmatpush1.msra.mxu0 %v318
  %1134 = vmatprep.subr.mxu0 %v317
  %1135 = vmatpush1.msra.mxu0 %v316
  %1136 = vmatprep.subr.mxu0 %v315
  %1137 = vmatpush1.msra.mxu0 %v314
  %1138 = vmatprep.subr.mxu0 %v313
  %1139 = vmatpush1.msra.mxu0 %v312
  %1140 = vmatprep.subr.mxu0 %v311
  %1141 = vmatpush1.msra.mxu0 %v310
  %1142 = vmatprep.subr.mxu0 %v309
  %1143 = vmatpush1.msra.mxu0 %v308
  %1144 = vmatprep.subr.mxu0 %v307
  %1145 = vmatpush1.msra.mxu0 %v306
  %1146 = vmatprep.subr.mxu0 %v369
  %1147 = vmatpush2.msra.mxu0 %v368
  %1148 = vmatprep.subr.mxu0 %v367
  %1149 = vmatpush2.msra.mxu0 %v366
  %1150 = vmatprep.subr.mxu0 %v365
  %1151 = vmatpush2.msra.mxu0 %v364
  %1152 = vmatprep.subr.mxu0 %v363
  %1153 = vmatpush2.msra.mxu0 %v362
  %1154 = vmatprep.subr.mxu0 %v361
  %1155 = vmatpush2.msra.mxu0 %v360
  %1156 = vmatprep.subr.mxu0 %v359
  %1157 = vmatpush2.msra.mxu0 %v358
  %1158 = vmatprep.subr.mxu0 %v357
  %1159 = vmatpush2.msra.mxu0 %v356
  %1160 = vmatprep.subr.mxu0 %v355
  %1161 = vmatpush2.msra.mxu0 %v354
  %1162 = vmatprep.subr.mxu0 %v353
  %1163 = vmatpush2.msra.mxu0 %v352
  %1164 = vmatprep.subr.mxu0 %v351
  %1165 = vmatpush2.msra.mxu0 %v350
  %1166 = vmatprep.subr.mxu0 %v349
  %1167 = vmatpush2.msra.mxu0 %v348
  %1168 = vmatprep.subr.mxu0 %v347
  %1169 = vmatpush2.msra.mxu0 %v346
  %1170 = vmatprep.subr.mxu0 %v345
  %1171 = vmatpush2.msra.mxu0 %v344
  %1172 = vmatprep.subr.mxu0 %v343
  %1173 = vmatpush2.msra.mxu0 %v342
  %1174 = vmatprep.subr.mxu0 %v341
  %1175 = vmatpush2.msra.mxu0 %v340
  %1176 = vmatprep.subr.mxu0 %v339
  %1177 = vmatpush2.msra.mxu0 %v338
  %1178 = vmatprep.mubr.f32.mxu0 %v35
  %1179 = vmatmul.mubr.f32.gmra.mxu0 %v34
  %v1180 = vpop.f32.mrf.mxu0
  %v1181 = vadd.f32 %v1110, %v1180
  %v1182 = vpop.f32.mrf.mxu0
  %v1183 = vadd.f32 %v1112, %v1182
  %1184 = vdwg.mxu0
  %1185 = vmatprep.subr.mxu0 %v401
  %1186 = vmatpush1.msra.mxu0 %v400
  %1187 = vmatprep.subr.mxu0 %v399
  %1188 = vmatpush1.msra.mxu0 %v398
  %1189 = vmatprep.subr.mxu0 %v397
  %1190 = vmatpush1.msra.mxu0 %v396
  %1191 = vmatprep.subr.mxu0 %v395
  %1192 = vmatpush1.msra.mxu0 %v394
  %1193 = vmatprep.subr.mxu0 %v393
  %1194 = vmatpush1.msra.mxu0 %v392
  %1195 = vmatprep.subr.mxu0 %v391
  %1196 = vmatpush1.msra.mxu0 %v390
  %1197 = vmatprep.subr.mxu0 %v389
  %1198 = vmatpush1.msra.mxu0 %v388
  %1199 = vmatprep.subr.mxu0 %v387
  %1200 = vmatpush1.msra.mxu0 %v386
  %1201 = vmatprep.subr.mxu0 %v385
  %1202 = vmatpush1.msra.mxu0 %v384
  %1203 = vmatprep.subr.mxu0 %v383
  %1204 = vmatpush1.msra.mxu0 %v382
  %1205 = vmatprep.subr.mxu0 %v381
  %1206 = vmatpush1.msra.mxu0 %v380
  %1207 = vmatprep.subr.mxu0 %v379
  %1208 = vmatpush1.msra.mxu0 %v378
  %1209 = vmatprep.subr.mxu0 %v377
  %1210 = vmatpush1.msra.mxu0 %v376
  %1211 = vmatprep.subr.mxu0 %v375
  %1212 = vmatpush1.msra.mxu0 %v374
  %1213 = vmatprep.subr.mxu0 %v373
  %1214 = vmatpush1.msra.mxu0 %v372
  %1215 = vmatprep.subr.mxu0 %v371
  %1216 = vmatpush1.msra.mxu0 %v370
  %1217 = vmatprep.subr.mxu0 %v433
  %1218 = vmatpush2.msra.mxu0 %v432
  %1219 = vmatprep.subr.mxu0 %v431
  %1220 = vmatpush2.msra.mxu0 %v430
  %1221 = vmatprep.subr.mxu0 %v429
  %1222 = vmatpush2.msra.mxu0 %v428
  %1223 = vmatprep.subr.mxu0 %v427
  %1224 = vmatpush2.msra.mxu0 %v426
  %1225 = vmatprep.subr.mxu0 %v425
  %1226 = vmatpush2.msra.mxu0 %v424
  %1227 = vmatprep.subr.mxu0 %v423
  %1228 = vmatpush2.msra.mxu0 %v422
  %1229 = vmatprep.subr.mxu0 %v421
  %1230 = vmatpush2.msra.mxu0 %v420
  %1231 = vmatprep.subr.mxu0 %v419
  %1232 = vmatpush2.msra.mxu0 %v418
  %1233 = vmatprep.subr.mxu0 %v417
  %1234 = vmatpush2.msra.mxu0 %v416
  %1235 = vmatprep.subr.mxu0 %v415
  %1236 = vmatpush2.msra.mxu0 %v414
  %1237 = vmatprep.subr.mxu0 %v413
  %1238 = vmatpush2.msra.mxu0 %v412
  %1239 = vmatprep.subr.mxu0 %v411
  %1240 = vmatpush2.msra.mxu0 %v410
  %1241 = vmatprep.subr.mxu0 %v409
  %1242 = vmatpush2.msra.mxu0 %v408
  %1243 = vmatprep.subr.mxu0 %v407
  %1244 = vmatpush2.msra.mxu0 %v406
  %1245 = vmatprep.subr.mxu0 %v405
  %1246 = vmatpush2.msra.mxu0 %v404
  %1247 = vmatprep.subr.mxu0 %v403
  %1248 = vmatpush2.msra.mxu0 %v402
  %1249 = vmatprep.mubr.f32.mxu0 %v37
  %1250 = vmatmul.mubr.f32.gmra.mxu0 %v36
  %v1251 = vpop.f32.mrf.mxu0
  %v1252 = vadd.f32 %v1181, %v1251
  %v1253 = vpop.f32.mrf.mxu0
  %v1254 = vadd.f32 %v1183, %v1253
  %1255 = vdwg.mxu0
  %1256 = vmatprep.subr.mxu0 %v465
  %1257 = vmatpush1.msra.mxu0 %v464
  %1258 = vmatprep.subr.mxu0 %v463
  %1259 = vmatpush1.msra.mxu0 %v462
  %1260 = vmatprep.subr.mxu0 %v461
  %1261 = vmatpush1.msra.mxu0 %v460
  %1262 = vmatprep.subr.mxu0 %v459
  %1263 = vmatpush1.msra.mxu0 %v458
  %1264 = vmatprep.subr.mxu0 %v457
  %1265 = vmatpush1.msra.mxu0 %v456
  %1266 = vmatprep.subr.mxu0 %v455
  %1267 = vmatpush1.msra.mxu0 %v454
  %1268 = vmatprep.subr.mxu0 %v453
  %1269 = vmatpush1.msra.mxu0 %v452
  %1270 = vmatprep.subr.mxu0 %v451
  %1271 = vmatpush1.msra.mxu0 %v450
  %1272 = vmatprep.subr.mxu0 %v449
  %1273 = vmatpush1.msra.mxu0 %v448
  %1274 = vmatprep.subr.mxu0 %v447
  %1275 = vmatpush1.msra.mxu0 %v446
  %1276 = vmatprep.subr.mxu0 %v445
  %1277 = vmatpush1.msra.mxu0 %v444
  %1278 = vmatprep.subr.mxu0 %v443
  %1279 = vmatpush1.msra.mxu0 %v442
  %1280 = vmatprep.subr.mxu0 %v441
  %1281 = vmatpush1.msra.mxu0 %v440
  %1282 = vmatprep.subr.mxu0 %v439
  %1283 = vmatpush1.msra.mxu0 %v438
  %1284 = vmatprep.subr.mxu0 %v437
  %1285 = vmatpush1.msra.mxu0 %v436
  %1286 = vmatprep.subr.mxu0 %v435
  %1287 = vmatpush1.msra.mxu0 %v434
  %1288 = vmatprep.subr.mxu0 %v497
  %1289 = vmatpush2.msra.mxu0 %v496
  %1290 = vmatprep.subr.mxu0 %v495
  %1291 = vmatpush2.msra.mxu0 %v494
  %1292 = vmatprep.subr.mxu0 %v493
  %1293 = vmatpush2.msra.mxu0 %v492
  %1294 = vmatprep.subr.mxu0 %v491
  %1295 = vmatpush2.msra.mxu0 %v490
  %1296 = vmatprep.subr.mxu0 %v489
  %1297 = vmatpush2.msra.mxu0 %v488
  %1298 = vmatprep.subr.mxu0 %v487
  %1299 = vmatpush2.msra.mxu0 %v486
  %1300 = vmatprep.subr.mxu0 %v485
  %1301 = vmatpush2.msra.mxu0 %v484
  %1302 = vmatprep.subr.mxu0 %v483
  %1303 = vmatpush2.msra.mxu0 %v482
  %1304 = vmatprep.subr.mxu0 %v481
  %1305 = vmatpush2.msra.mxu0 %v480
  %1306 = vmatprep.subr.mxu0 %v479
  %1307 = vmatpush2.msra.mxu0 %v478
  %1308 = vmatprep.subr.mxu0 %v477
  %1309 = vmatpush2.msra.mxu0 %v476
  %1310 = vmatprep.subr.mxu0 %v475
  %1311 = vmatpush2.msra.mxu0 %v474
  %1312 = vmatprep.subr.mxu0 %v473
  %1313 = vmatpush2.msra.mxu0 %v472
  %1314 = vmatprep.subr.mxu0 %v471
  %1315 = vmatpush2.msra.mxu0 %v470
  %1316 = vmatprep.subr.mxu0 %v469
  %1317 = vmatpush2.msra.mxu0 %v468
  %1318 = vmatprep.subr.mxu0 %v467
  %1319 = vmatpush2.msra.mxu0 %v466
  %1320 = vmatprep.mubr.f32.mxu0 %v39
  %1321 = vmatmul.mubr.f32.gmra.mxu0 %v38
  %v1322 = vpop.f32.mrf.mxu0
  %v1323 = vadd.f32 %v1252, %v1322
  %v1324 = vpop.f32.mrf.mxu0
  %v1325 = vadd.f32 %v1254, %v1324
  %1326 = vdwg.mxu0
  %1327 = vmatprep.subr.mxu0 %v529
  %1328 = vmatpush1.msra.mxu0 %v528
  %1329 = vmatprep.subr.mxu0 %v527
  %1330 = vmatpush1.msra.mxu0 %v526
  %1331 = vmatprep.subr.mxu0 %v525
  %1332 = vmatpush1.msra.mxu0 %v524
  %1333 = vmatprep.subr.mxu0 %v523
  %1334 = vmatpush1.msra.mxu0 %v522
  %1335 = vmatprep.subr.mxu0 %v521
  %1336 = vmatpush1.msra.mxu0 %v520
  %1337 = vmatprep.subr.mxu0 %v519
  %1338 = vmatpush1.msra.mxu0 %v518
  %1339 = vmatprep.subr.mxu0 %v517
  %1340 = vmatpush1.msra.mxu0 %v516
  %1341 = vmatprep.subr.mxu0 %v515
  %1342 = vmatpush1.msra.mxu0 %v514
  %1343 = vmatprep.subr.mxu0 %v513
  %1344 = vmatpush1.msra.mxu0 %v512
  %1345 = vmatprep.subr.mxu0 %v511
  %1346 = vmatpush1.msra.mxu0 %v510
  %1347 = vmatprep.subr.mxu0 %v509
  %1348 = vmatpush1.msra.mxu0 %v508
  %1349 = vmatprep.subr.mxu0 %v507
  %1350 = vmatpush1.msra.mxu0 %v506
  %1351 = vmatprep.subr.mxu0 %v505
  %1352 = vmatpush1.msra.mxu0 %v504
  %1353 = vmatprep.subr.mxu0 %v503
  %1354 = vmatpush1.msra.mxu0 %v502
  %1355 = vmatprep.subr.mxu0 %v501
  %1356 = vmatpush1.msra.mxu0 %v500
  %1357 = vmatprep.subr.mxu0 %v499
  %1358 = vmatpush1.msra.mxu0 %v498
  %1359 = vmatprep.subr.mxu0 %v561
  %1360 = vmatpush2.msra.mxu0 %v560
  %1361 = vmatprep.subr.mxu0 %v559
  %1362 = vmatpush2.msra.mxu0 %v558
  %1363 = vmatprep.subr.mxu0 %v557
  %1364 = vmatpush2.msra.mxu0 %v556
  %1365 = vmatprep.subr.mxu0 %v555
  %1366 = vmatpush2.msra.mxu0 %v554
  %1367 = vmatprep.subr.mxu0 %v553
  %1368 = vmatpush2.msra.mxu0 %v552
  %1369 = vmatprep.subr.mxu0 %v551
  %1370 = vmatpush2.msra.mxu0 %v550
  %1371 = vmatprep.subr.mxu0 %v549
  %1372 = vmatpush2.msra.mxu0 %v548
  %1373 = vmatprep.subr.mxu0 %v547
  %1374 = vmatpush2.msra.mxu0 %v546
  %1375 = vmatprep.subr.mxu0 %v545
  %1376 = vmatpush2.msra.mxu0 %v544
  %1377 = vmatprep.subr.mxu0 %v543
  %1378 = vmatpush2.msra.mxu0 %v542
  %1379 = vmatprep.subr.mxu0 %v541
  %1380 = vmatpush2.msra.mxu0 %v540
  %1381 = vmatprep.subr.mxu0 %v539
  %1382 = vmatpush2.msra.mxu0 %v538
  %1383 = vmatprep.subr.mxu0 %v537
  %1384 = vmatpush2.msra.mxu0 %v536
  %1385 = vmatprep.subr.mxu0 %v535
  %1386 = vmatpush2.msra.mxu0 %v534
  %1387 = vmatprep.subr.mxu0 %v533
  %1388 = vmatpush2.msra.mxu0 %v532
  %1389 = vmatprep.subr.mxu0 %v531
  %1390 = vmatpush2.msra.mxu0 %v530
  %1391 = vmatprep.mubr.f32.mxu0 %v41
  %1392 = vmatmul.mubr.f32.gmra.mxu0 %v40
  %v1393 = vpop.f32.mrf.mxu0
  %v1394 = vadd.f32 %v1323, %v1393
  %v1395 = vpop.f32.mrf.mxu0
  %v1396 = vadd.f32 %v1325, %v1395
  %1397 = vdwg.mxu0
  %1398 = vmatprep.subr.mxu0 %v593
  %1399 = vmatpush1.msra.mxu0 %v592
  %1400 = vmatprep.subr.mxu0 %v591
  %1401 = vmatpush1.msra.mxu0 %v590
  %1402 = vmatprep.subr.mxu0 %v589
  %1403 = vmatpush1.msra.mxu0 %v588
  %1404 = vmatprep.subr.mxu0 %v587
  %1405 = vmatpush1.msra.mxu0 %v586
  %1406 = vmatprep.subr.mxu0 %v585
  %1407 = vmatpush1.msra.mxu0 %v584
  %1408 = vmatprep.subr.mxu0 %v583
  %1409 = vmatpush1.msra.mxu0 %v582
  %1410 = vmatprep.subr.mxu0 %v581
  %1411 = vmatpush1.msra.mxu0 %v580
  %1412 = vmatprep.subr.mxu0 %v579
  %1413 = vmatpush1.msra.mxu0 %v578
  %1414 = vmatprep.subr.mxu0 %v577
  %1415 = vmatpush1.msra.mxu0 %v576
  %1416 = vmatprep.subr.mxu0 %v575
  %1417 = vmatpush1.msra.mxu0 %v574
  %1418 = vmatprep.subr.mxu0 %v573
  %1419 = vmatpush1.msra.mxu0 %v572
  %1420 = vmatprep.subr.mxu0 %v571
  %1421 = vmatpush1.msra.mxu0 %v570
  %1422 = vmatprep.subr.mxu0 %v569
  %1423 = vmatpush1.msra.mxu0 %v568
  %1424 = vmatprep.subr.mxu0 %v567
  %1425 = vmatpush1.msra.mxu0 %v566
  %1426 = vmatprep.subr.mxu0 %v565
  %1427 = vmatpush1.msra.mxu0 %v564
  %1428 = vmatprep.subr.mxu0 %v563
  %1429 = vmatpush1.msra.mxu0 %v562
  %1430 = vmatprep.subr.mxu0 %v625
  %1431 = vmatpush2.msra.mxu0 %v624
  %1432 = vmatprep.subr.mxu0 %v623
  %1433 = vmatpush2.msra.mxu0 %v622
  %1434 = vmatprep.subr.mxu0 %v621
  %1435 = vmatpush2.msra.mxu0 %v620
  %1436 = vmatprep.subr.mxu0 %v619
  %1437 = vmatpush2.msra.mxu0 %v618
  %1438 = vmatprep.subr.mxu0 %v617
  %1439 = vmatpush2.msra.mxu0 %v616
  %1440 = vmatprep.subr.mxu0 %v615
  %1441 = vmatpush2.msra.mxu0 %v614
  %1442 = vmatprep.subr.mxu0 %v613
  %1443 = vmatpush2.msra.mxu0 %v612
  %1444 = vmatprep.subr.mxu0 %v611
  %1445 = vmatpush2.msra.mxu0 %v610
  %1446 = vmatprep.subr.mxu0 %v609
  %1447 = vmatpush2.msra.mxu0 %v608
  %1448 = vmatprep.subr.mxu0 %v607
  %1449 = vmatpush2.msra.mxu0 %v606
  %1450 = vmatprep.subr.mxu0 %v605
  %1451 = vmatpush2.msra.mxu0 %v604
  %1452 = vmatprep.subr.mxu0 %v603
  %1453 = vmatpush2.msra.mxu0 %v602
  %1454 = vmatprep.subr.mxu0 %v601
  %1455 = vmatpush2.msra.mxu0 %v600
  %1456 = vmatprep.subr.mxu0 %v599
  %1457 = vmatpush2.msra.mxu0 %v598
  %1458 = vmatprep.subr.mxu0 %v597
  %1459 = vmatpush2.msra.mxu0 %v596
  %1460 = vmatprep.subr.mxu0 %v595
  %1461 = vmatpush2.msra.mxu0 %v594
  %1462 = vmatprep.mubr.f32.mxu0 %v43
  %1463 = vmatmul.mubr.f32.gmra.mxu0 %v42
  %v1464 = vpop.f32.mrf.mxu0
  %v1465 = vadd.f32 %v1394, %v1464
  %v1466 = vpop.f32.mrf.mxu0
  %v1467 = vadd.f32 %v1396, %v1466
  %1468 = vdwg.mxu0
  %1469 = vmatprep.subr.mxu0 %v657
  %1470 = vmatpush1.msra.mxu0 %v656
  %1471 = vmatprep.subr.mxu0 %v655
  %1472 = vmatpush1.msra.mxu0 %v654
  %1473 = vmatprep.subr.mxu0 %v653
  %1474 = vmatpush1.msra.mxu0 %v652
  %1475 = vmatprep.subr.mxu0 %v651
  %1476 = vmatpush1.msra.mxu0 %v650
  %1477 = vmatprep.subr.mxu0 %v649
  %1478 = vmatpush1.msra.mxu0 %v648
  %1479 = vmatprep.subr.mxu0 %v647
  %1480 = vmatpush1.msra.mxu0 %v646
  %1481 = vmatprep.subr.mxu0 %v645
  %1482 = vmatpush1.msra.mxu0 %v644
  %1483 = vmatprep.subr.mxu0 %v643
  %1484 = vmatpush1.msra.mxu0 %v642
  %1485 = vmatprep.subr.mxu0 %v641
  %1486 = vmatpush1.msra.mxu0 %v640
  %1487 = vmatprep.subr.mxu0 %v639
  %1488 = vmatpush1.msra.mxu0 %v638
  %1489 = vmatprep.subr.mxu0 %v637
  %1490 = vmatpush1.msra.mxu0 %v636
  %1491 = vmatprep.subr.mxu0 %v635
  %1492 = vmatpush1.msra.mxu0 %v634
  %1493 = vmatprep.subr.mxu0 %v633
  %1494 = vmatpush1.msra.mxu0 %v632
  %1495 = vmatprep.subr.mxu0 %v631
  %1496 = vmatpush1.msra.mxu0 %v630
  %1497 = vmatprep.subr.mxu0 %v629
  %1498 = vmatpush1.msra.mxu0 %v628
  %1499 = vmatprep.subr.mxu0 %v627
  %1500 = vmatpush1.msra.mxu0 %v626
  %1501 = vmatprep.subr.mxu0 %v689
  %1502 = vmatpush2.msra.mxu0 %v688
  %1503 = vmatprep.subr.mxu0 %v687
  %1504 = vmatpush2.msra.mxu0 %v686
  %1505 = vmatprep.subr.mxu0 %v685
  %1506 = vmatpush2.msra.mxu0 %v684
  %1507 = vmatprep.subr.mxu0 %v683
  %1508 = vmatpush2.msra.mxu0 %v682
  %1509 = vmatprep.subr.mxu0 %v681
  %1510 = vmatpush2.msra.mxu0 %v680
  %1511 = vmatprep.subr.mxu0 %v679
  %1512 = vmatpush2.msra.mxu0 %v678
  %1513 = vmatprep.subr.mxu0 %v677
  %1514 = vmatpush2.msra.mxu0 %v676
  %1515 = vmatprep.subr.mxu0 %v675
  %1516 = vmatpush2.msra.mxu0 %v674
  %1517 = vmatprep.subr.mxu0 %v673
  %1518 = vmatpush2.msra.mxu0 %v672
  %1519 = vmatprep.subr.mxu0 %v671
  %1520 = vmatpush2.msra.mxu0 %v670
  %1521 = vmatprep.subr.mxu0 %v669
  %1522 = vmatpush2.msra.mxu0 %v668
  %1523 = vmatprep.subr.mxu0 %v667
  %1524 = vmatpush2.msra.mxu0 %v666
  %1525 = vmatprep.subr.mxu0 %v665
  %1526 = vmatpush2.msra.mxu0 %v664
  %1527 = vmatprep.subr.mxu0 %v663
  %1528 = vmatpush2.msra.mxu0 %v662
  %1529 = vmatprep.subr.mxu0 %v661
  %1530 = vmatpush2.msra.mxu0 %v660
  %1531 = vmatprep.subr.mxu0 %v659
  %1532 = vmatpush2.msra.mxu0 %v658
  %1533 = vmatprep.mubr.f32.mxu0 %v45
  %1534 = vmatmul.mubr.f32.gmra.mxu0 %v44
  %v1535 = vpop.f32.mrf.mxu0
  %v1536 = vadd.f32 %v1465, %v1535
  %v1537 = vpop.f32.mrf.mxu0
  %v1538 = vadd.f32 %v1467, %v1537
  %1539 = vdwg.mxu0
  %1540 = vmatprep.subr.mxu0 %v721
  %1541 = vmatpush1.msra.mxu0 %v720
  %1542 = vmatprep.subr.mxu0 %v719
  %1543 = vmatpush1.msra.mxu0 %v718
  %1544 = vmatprep.subr.mxu0 %v717
  %1545 = vmatpush1.msra.mxu0 %v716
  %1546 = vmatprep.subr.mxu0 %v715
  %1547 = vmatpush1.msra.mxu0 %v714
  %1548 = vmatprep.subr.mxu0 %v713
  %1549 = vmatpush1.msra.mxu0 %v712
  %1550 = vmatprep.subr.mxu0 %v711
  %1551 = vmatpush1.msra.mxu0 %v710
  %1552 = vmatprep.subr.mxu0 %v709
  %1553 = vmatpush1.msra.mxu0 %v708
  %1554 = vmatprep.subr.mxu0 %v707
  %1555 = vmatpush1.msra.mxu0 %v706
  %1556 = vmatprep.subr.mxu0 %v705
  %1557 = vmatpush1.msra.mxu0 %v704
  %1558 = vmatprep.subr.mxu0 %v703
  %1559 = vmatpush1.msra.mxu0 %v702
  %1560 = vmatprep.subr.mxu0 %v701
  %1561 = vmatpush1.msra.mxu0 %v700
  %1562 = vmatprep.subr.mxu0 %v699
  %1563 = vmatpush1.msra.mxu0 %v698
  %1564 = vmatprep.subr.mxu0 %v697
  %1565 = vmatpush1.msra.mxu0 %v696
  %1566 = vmatprep.subr.mxu0 %v695
  %1567 = vmatpush1.msra.mxu0 %v694
  %1568 = vmatprep.subr.mxu0 %v693
  %1569 = vmatpush1.msra.mxu0 %v692
  %1570 = vmatprep.subr.mxu0 %v691
  %1571 = vmatpush1.msra.mxu0 %v690
  %1572 = vmatprep.subr.mxu0 %v753
  %1573 = vmatpush2.msra.mxu0 %v752
  %1574 = vmatprep.subr.mxu0 %v751
  %1575 = vmatpush2.msra.mxu0 %v750
  %1576 = vmatprep.subr.mxu0 %v749
  %1577 = vmatpush2.msra.mxu0 %v748
  %1578 = vmatprep.subr.mxu0 %v747
  %1579 = vmatpush2.msra.mxu0 %v746
  %1580 = vmatprep.subr.mxu0 %v745
  %1581 = vmatpush2.msra.mxu0 %v744
  %1582 = vmatprep.subr.mxu0 %v743
  %1583 = vmatpush2.msra.mxu0 %v742
  %1584 = vmatprep.subr.mxu0 %v741
  %1585 = vmatpush2.msra.mxu0 %v740
  %1586 = vmatprep.subr.mxu0 %v739
  %1587 = vmatpush2.msra.mxu0 %v738
  %1588 = vmatprep.subr.mxu0 %v737
  %1589 = vmatpush2.msra.mxu0 %v736
  %1590 = vmatprep.subr.mxu0 %v735
  %1591 = vmatpush2.msra.mxu0 %v734
  %1592 = vmatprep.subr.mxu0 %v733
  %1593 = vmatpush2.msra.mxu0 %v732
  %1594 = vmatprep.subr.mxu0 %v731
  %1595 = vmatpush2.msra.mxu0 %v730
  %1596 = vmatprep.subr.mxu0 %v729
  %1597 = vmatpush2.msra.mxu0 %v728
  %1598 = vmatprep.subr.mxu0 %v727
  %1599 = vmatpush2.msra.mxu0 %v726
  %1600 = vmatprep.subr.mxu0 %v725
  %1601 = vmatpush2.msra.mxu0 %v724
  %1602 = vmatprep.subr.mxu0 %v723
  %1603 = vmatpush2.msra.mxu0 %v722
  %1604 = vmatprep.mubr.f32.mxu0 %v47
  %1605 = vmatmul.mubr.f32.gmra.mxu0 %v46
  %v1606 = vpop.f32.mrf.mxu0
  %v1607 = vadd.f32 %v1536, %v1606
  %v1608 = vpop.f32.mrf.mxu0
  %v1609 = vadd.f32 %v1538, %v1608
  %1610 = vdwg.mxu0
  %1611 = vmatprep.subr.mxu0 %v785
  %1612 = vmatpush1.msra.mxu0 %v784
  %1613 = vmatprep.subr.mxu0 %v783
  %1614 = vmatpush1.msra.mxu0 %v782
  %1615 = vmatprep.subr.mxu0 %v781
  %1616 = vmatpush1.msra.mxu0 %v780
  %1617 = vmatprep.subr.mxu0 %v779
  %1618 = vmatpush1.msra.mxu0 %v778
  %1619 = vmatprep.subr.mxu0 %v777
  %1620 = vmatpush1.msra.mxu0 %v776
  %1621 = vmatprep.subr.mxu0 %v775
  %1622 = vmatpush1.msra.mxu0 %v774
  %1623 = vmatprep.subr.mxu0 %v773
  %1624 = vmatpush1.msra.mxu0 %v772
  %1625 = vmatprep.subr.mxu0 %v771
  %1626 = vmatpush1.msra.mxu0 %v770
  %1627 = vmatprep.subr.mxu0 %v769
  %1628 = vmatpush1.msra.mxu0 %v768
  %1629 = vmatprep.subr.mxu0 %v767
  %1630 = vmatpush1.msra.mxu0 %v766
  %1631 = vmatprep.subr.mxu0 %v765
  %1632 = vmatpush1.msra.mxu0 %v764
  %1633 = vmatprep.subr.mxu0 %v763
  %1634 = vmatpush1.msra.mxu0 %v762
  %1635 = vmatprep.subr.mxu0 %v761
  %1636 = vmatpush1.msra.mxu0 %v760
  %1637 = vmatprep.subr.mxu0 %v759
  %1638 = vmatpush1.msra.mxu0 %v758
  %1639 = vmatprep.subr.mxu0 %v757
  %1640 = vmatpush1.msra.mxu0 %v756
  %1641 = vmatprep.subr.mxu0 %v755
  %1642 = vmatpush1.msra.mxu0 %v754
  %1643 = vmatprep.subr.mxu0 %v817
  %1644 = vmatpush2.msra.mxu0 %v816
  %1645 = vmatprep.subr.mxu0 %v815
  %1646 = vmatpush2.msra.mxu0 %v814
  %1647 = vmatprep.subr.mxu0 %v813
  %1648 = vmatpush2.msra.mxu0 %v812
  %1649 = vmatprep.subr.mxu0 %v811
  %1650 = vmatpush2.msra.mxu0 %v810
  %1651 = vmatprep.subr.mxu0 %v809
  %1652 = vmatpush2.msra.mxu0 %v808
  %1653 = vmatprep.subr.mxu0 %v807
  %1654 = vmatpush2.msra.mxu0 %v806
  %1655 = vmatprep.subr.mxu0 %v805
  %1656 = vmatpush2.msra.mxu0 %v804
  %1657 = vmatprep.subr.mxu0 %v803
  %1658 = vmatpush2.msra.mxu0 %v802
  %1659 = vmatprep.subr.mxu0 %v801
  %1660 = vmatpush2.msra.mxu0 %v800
  %1661 = vmatprep.subr.mxu0 %v799
  %1662 = vmatpush2.msra.mxu0 %v798
  %1663 = vmatprep.subr.mxu0 %v797
  %1664 = vmatpush2.msra.mxu0 %v796
  %1665 = vmatprep.subr.mxu0 %v795
  %1666 = vmatpush2.msra.mxu0 %v794
  %1667 = vmatprep.subr.mxu0 %v793
  %1668 = vmatpush2.msra.mxu0 %v792
  %1669 = vmatprep.subr.mxu0 %v791
  %1670 = vmatpush2.msra.mxu0 %v790
  %1671 = vmatprep.subr.mxu0 %v789
  %1672 = vmatpush2.msra.mxu0 %v788
  %1673 = vmatprep.subr.mxu0 %v787
  %1674 = vmatpush2.msra.mxu0 %v786
  %1675 = vmatprep.mubr.f32.mxu0 %v49
  %1676 = vmatmul.mubr.f32.gmra.mxu0 %v48
  %v1677 = vpop.f32.mrf.mxu0
  %v1678 = vadd.f32 %v1607, %v1677
  %v1679 = vpop.f32.mrf.mxu0
  %v1680 = vadd.f32 %v1609, %v1679
  %1681 = vdwg.mxu0
  %v1682 = vld [vmem:[%s3] sm:$0x1]
  %v1683 = vld [vmem:[%s4] sm:$0x1]
  %1684 = vadd.xlane.f32.xlu0 %v1678
  %v1685 = vpop.xlane.xlu0 %1684
  %v1686 = vrcp.pop 128.0
  %v1687 = vmul.f32 %v1685, %v1686
  %v1688 = vsub.f32 %v1678, %v1687
  %v1689 = vmul.f32 %v1688, %v1688
  %1690 = vadd.xlane.f32.xlu0 %v1689
  %v1691 = vpop.xlane.xlu0 %1690
  %v1692 = vmul.f32 %v1691, %v1686
  %v1693 = vadd.f32 %v1692, 1e-05
  %v1694 = vrsqrt.pop %v1693
  %v1695 = vmul.f32 %v1688, %v1694
  %v1697 = vlaneseq
  %v1698 = vshrl.u32 %v1697, 7
  %v1699 = vsub.s32 0, %v1698
  %v1700 = vrot.slane %v1682, %v1699
  %v1702 = vmul.f32 %v1695, %v1700
  %v1704 = vlaneseq
  %v1705 = vshrl.u32 %v1704, 7
  %v1706 = vsub.s32 0, %v1705
  %v1707 = vrot.slane %v1683, %v1706
  %v1709 = vadd.f32 %v1702, %v1707
  %v1710 = vxor.u32 %v1709, 2147483648
  %v1711 = vmul.f32 %v1710, 1.442695
  %v1712 = vpow.pop %v1711
  %v1713 = vadd.f32 %v1712, 1.0
  %v1714 = vrcp.pop %v1713
  %v1715 = vmul.f32 1.0, %v1714
  %v1716 = vmul.f32 %v1709, %v1715
  %v1717 = vld [vmem:[%s3 + $0x1] sm:$0x1]
  %v1718 = vld [vmem:[%s4 + $0x1] sm:$0x1]
  %1719 = vadd.xlane.f32.xlu0 %v1680
  %v1720 = vpop.xlane.xlu0 %1719
  %v1721 = vmul.f32 %v1720, %v1686
  %v1722 = vsub.f32 %v1680, %v1721
  %v1723 = vmul.f32 %v1722, %v1722
  %1724 = vadd.xlane.f32.xlu0 %v1723
  %v1725 = vpop.xlane.xlu0 %1724
  %v1726 = vmul.f32 %v1725, %v1686
  %v1727 = vadd.f32 %v1726, 1e-05
  %v1728 = vrsqrt.pop %v1727
  %v1729 = vmul.f32 %v1722, %v1728
  %v1731 = vlaneseq
  %v1732 = vshrl.u32 %v1731, 7
  %v1733 = vsub.s32 0, %v1732
  %v1734 = vrot.slane %v1717, %v1733
  %v1736 = vmul.f32 %v1729, %v1734
  %v1738 = vlaneseq
  %v1739 = vshrl.u32 %v1738, 7
  %v1740 = vsub.s32 0, %v1739
  %v1741 = vrot.slane %v1718, %v1740
  %v1743 = vadd.f32 %v1736, %v1741
  %v1744 = vxor.u32 %v1743, 2147483648
  %v1745 = vmul.f32 %v1744, 1.442695
  %v1746 = vpow.pop %v1745
  %v1747 = vadd.f32 %v1746, 1.0
  %v1748 = vrcp.pop %v1747
  %v1749 = vmul.f32 1.0, %v1748
  %v1750 = vmul.f32 %v1743, %v1749
  %v1751 = vld [vmem:[%s5] sm:$0xff]
  %v1752 = vld [vmem:[%s5 + $0x8] sm:$0xff]
  %v1753 = vld [vmem:[%s5 + $0x10] sm:$0xff]
  %v1754 = vld [vmem:[%s5 + $0x18] sm:$0xff]
  %v1755 = vld [vmem:[%s5 + $0x20] sm:$0xff]
  %v1756 = vld [vmem:[%s5 + $0x28] sm:$0xff]
  %v1757 = vld [vmem:[%s5 + $0x30] sm:$0xff]
  %v1758 = vld [vmem:[%s5 + $0x38] sm:$0xff]
  %v1759 = vld [vmem:[%s5 + $0x40] sm:$0xff]
  %v1760 = vld [vmem:[%s5 + $0x48] sm:$0xff]
  %v1761 = vld [vmem:[%s5 + $0x50] sm:$0xff]
  %v1762 = vld [vmem:[%s5 + $0x58] sm:$0xff]
  %v1763 = vld [vmem:[%s5 + $0x60] sm:$0xff]
  %v1764 = vld [vmem:[%s5 + $0x68] sm:$0xff]
  %v1765 = vld [vmem:[%s5 + $0x70] sm:$0xff]
  %v1766 = vld [vmem:[%s5 + $0x78] sm:$0xff]
  %v1767 = vld [vmem:[%s5 + $0x80] sm:$0xff]
  %v1768 = vld [vmem:[%s5 + $0x88] sm:$0xff]
  %v1769 = vld [vmem:[%s5 + $0x90] sm:$0xff]
  %v1770 = vld [vmem:[%s5 + $0x98] sm:$0xff]
  %v1771 = vld [vmem:[%s5 + $0xa0] sm:$0xff]
  %v1772 = vld [vmem:[%s5 + $0xa8] sm:$0xff]
  %v1773 = vld [vmem:[%s5 + $0xb0] sm:$0xff]
  %v1774 = vld [vmem:[%s5 + $0xb8] sm:$0xff]
  %v1775 = vld [vmem:[%s5 + $0xc0] sm:$0xff]
  %v1776 = vld [vmem:[%s5 + $0xc8] sm:$0xff]
  %v1777 = vld [vmem:[%s5 + $0xd0] sm:$0xff]
  %v1778 = vld [vmem:[%s5 + $0xd8] sm:$0xff]
  %v1779 = vld [vmem:[%s5 + $0xe0] sm:$0xff]
  %v1780 = vld [vmem:[%s5 + $0xe8] sm:$0xff]
  %v1781 = vld [vmem:[%s5 + $0xf0] sm:$0xff]
  %v1782 = vld [vmem:[%s5 + $0xf8] sm:$0xff]
  %v1783 = vld [vmem:[%s5 + $0x100] sm:$0xff]
  %v1784 = vld [vmem:[%s5 + $0x108] sm:$0xff]
  %v1785 = vld [vmem:[%s5 + $0x110] sm:$0xff]
  %v1786 = vld [vmem:[%s5 + $0x118] sm:$0xff]
  %v1787 = vld [vmem:[%s5 + $0x120] sm:$0xff]
  %v1788 = vld [vmem:[%s5 + $0x128] sm:$0xff]
  %v1789 = vld [vmem:[%s5 + $0x130] sm:$0xff]
  %v1790 = vld [vmem:[%s5 + $0x138] sm:$0xff]
  %v1791 = vld [vmem:[%s5 + $0x140] sm:$0xff]
  %v1792 = vld [vmem:[%s5 + $0x148] sm:$0xff]
  %v1793 = vld [vmem:[%s5 + $0x150] sm:$0xff]
  %v1794 = vld [vmem:[%s5 + $0x158] sm:$0xff]
  %v1795 = vld [vmem:[%s5 + $0x160] sm:$0xff]
  %v1796 = vld [vmem:[%s5 + $0x168] sm:$0xff]
  %v1797 = vld [vmem:[%s5 + $0x170] sm:$0xff]
  %v1798 = vld [vmem:[%s5 + $0x178] sm:$0xff]
  %v1799 = vld [vmem:[%s5 + $0x180] sm:$0xff]
  %v1800 = vld [vmem:[%s5 + $0x188] sm:$0xff]
  %v1801 = vld [vmem:[%s5 + $0x190] sm:$0xff]
  %v1802 = vld [vmem:[%s5 + $0x198] sm:$0xff]
  %v1803 = vld [vmem:[%s5 + $0x1a0] sm:$0xff]
  %v1804 = vld [vmem:[%s5 + $0x1a8] sm:$0xff]
  %v1805 = vld [vmem:[%s5 + $0x1b0] sm:$0xff]
  %v1806 = vld [vmem:[%s5 + $0x1b8] sm:$0xff]
  %v1807 = vld [vmem:[%s5 + $0x1c0] sm:$0xff]
  %v1808 = vld [vmem:[%s5 + $0x1c8] sm:$0xff]
  %v1809 = vld [vmem:[%s5 + $0x1d0] sm:$0xff]
  %v1810 = vld [vmem:[%s5 + $0x1d8] sm:$0xff]
  %v1811 = vld [vmem:[%s5 + $0x1e0] sm:$0xff]
  %v1812 = vld [vmem:[%s5 + $0x1e8] sm:$0xff]
  %v1813 = vld [vmem:[%s5 + $0x1f0] sm:$0xff]
  %v1814 = vld [vmem:[%s5 + $0x1f8] sm:$0xff]
  %1815 = vmatprep.subr.mxu0 %v1814
  %1816 = vmatpush1.msra.mxu0 %v1813
  %1817 = vmatprep.subr.mxu0 %v1812
  %1818 = vmatpush1.msra.mxu0 %v1811
  %1819 = vmatprep.subr.mxu0 %v1810
  %1820 = vmatpush1.msra.mxu0 %v1809
  %1821 = vmatprep.subr.mxu0 %v1808
  %1822 = vmatpush1.msra.mxu0 %v1807
  %1823 = vmatprep.subr.mxu0 %v1806
  %1824 = vmatpush1.msra.mxu0 %v1805
  %1825 = vmatprep.subr.mxu0 %v1804
  %1826 = vmatpush1.msra.mxu0 %v1803
  %1827 = vmatprep.subr.mxu0 %v1802
  %1828 = vmatpush1.msra.mxu0 %v1801
  %1829 = vmatprep.subr.mxu0 %v1800
  %1830 = vmatpush1.msra.mxu0 %v1799
  %1831 = vmatprep.subr.mxu0 %v1798
  %1832 = vmatpush1.msra.mxu0 %v1797
  %1833 = vmatprep.subr.mxu0 %v1796
  %1834 = vmatpush1.msra.mxu0 %v1795
  %1835 = vmatprep.subr.mxu0 %v1794
  %1836 = vmatpush1.msra.mxu0 %v1793
  %1837 = vmatprep.subr.mxu0 %v1792
  %1838 = vmatpush1.msra.mxu0 %v1791
  %1839 = vmatprep.subr.mxu0 %v1790
  %1840 = vmatpush1.msra.mxu0 %v1789
  %1841 = vmatprep.subr.mxu0 %v1788
  %1842 = vmatpush1.msra.mxu0 %v1787
  %1843 = vmatprep.subr.mxu0 %v1786
  %1844 = vmatpush1.msra.mxu0 %v1785
  %1845 = vmatprep.subr.mxu0 %v1784
  %1846 = vmatpush1.msra.mxu0 %v1783
  %1847 = vmatprep.subr.mxu0 0.0
  %1848 = vmatpush2.msra.mxu0 0.0
  %1849 = vmatprep.subr.mxu0 0.0
  %1850 = vmatpush2.msra.mxu0 0.0
  %1851 = vmatprep.subr.mxu0 0.0
  %1852 = vmatpush2.msra.mxu0 0.0
  %1853 = vmatprep.subr.mxu0 0.0
  %1854 = vmatpush2.msra.mxu0 0.0
  %1855 = vmatprep.subr.mxu0 0.0
  %1856 = vmatpush2.msra.mxu0 0.0
  %1857 = vmatprep.subr.mxu0 0.0
  %1858 = vmatpush2.msra.mxu0 0.0
  %1859 = vmatprep.subr.mxu0 0.0
  %1860 = vmatpush2.msra.mxu0 0.0
  %1861 = vmatprep.subr.mxu0 0.0
  %1862 = vmatpush2.msra.mxu0 0.0
  %1863 = vmatprep.subr.mxu0 0.0
  %1864 = vmatpush2.msra.mxu0 0.0
  %1865 = vmatprep.subr.mxu0 0.0
  %1866 = vmatpush2.msra.mxu0 0.0
  %1867 = vmatprep.subr.mxu0 0.0
  %1868 = vmatpush2.msra.mxu0 0.0
  %1869 = vmatprep.subr.mxu0 0.0
  %1870 = vmatpush2.msra.mxu0 0.0
  %1871 = vmatprep.subr.mxu0 0.0
  %1872 = vmatpush2.msra.mxu0 0.0
  %1873 = vmatprep.subr.mxu0 0.0
  %1874 = vmatpush2.msra.mxu0 0.0
  %1875 = vmatprep.subr.mxu0 0.0
  %1876 = vmatpush2.msra.mxu0 0.0
  %1877 = vmatprep.subr.mxu0 0.0
  %1878 = vmatpush2.msra.mxu0 0.0
  %1879 = vmatprep.mubr.f32.mxu0 0.0
  %1880 = vmatmul.mubr.f32.gmra.mxu0 %v1750
  %v1881 = vpop.f32.mrf.mxu0
  %v1882 = vadd.f32 0.0, %v1881
  %v1883 = vpop.f32.mrf.mxu0
  %v1884 = vadd.f32 0.0, %v1883
  %1885 = vdwg.mxu0
  %1886 = vmatprep.subr.mxu0 %v1782
  %1887 = vmatpush1.msra.mxu0 %v1781
  %1888 = vmatprep.subr.mxu0 %v1780
  %1889 = vmatpush1.msra.mxu0 %v1779
  %1890 = vmatprep.subr.mxu0 %v1778
  %1891 = vmatpush1.msra.mxu0 %v1777
  %1892 = vmatprep.subr.mxu0 %v1776
  %1893 = vmatpush1.msra.mxu0 %v1775
  %1894 = vmatprep.subr.mxu0 %v1774
  %1895 = vmatpush1.msra.mxu0 %v1773
  %1896 = vmatprep.subr.mxu0 %v1772
  %1897 = vmatpush1.msra.mxu0 %v1771
  %1898 = vmatprep.subr.mxu0 %v1770
  %1899 = vmatpush1.msra.mxu0 %v1769
  %1900 = vmatprep.subr.mxu0 %v1768
  %1901 = vmatpush1.msra.mxu0 %v1767
  %1902 = vmatprep.subr.mxu0 %v1766
  %1903 = vmatpush1.msra.mxu0 %v1765
  %1904 = vmatprep.subr.mxu0 %v1764
  %1905 = vmatpush1.msra.mxu0 %v1763
  %1906 = vmatprep.subr.mxu0 %v1762
  %1907 = vmatpush1.msra.mxu0 %v1761
  %1908 = vmatprep.subr.mxu0 %v1760
  %1909 = vmatpush1.msra.mxu0 %v1759
  %1910 = vmatprep.subr.mxu0 %v1758
  %1911 = vmatpush1.msra.mxu0 %v1757
  %1912 = vmatprep.subr.mxu0 %v1756
  %1913 = vmatpush1.msra.mxu0 %v1755
  %1914 = vmatprep.subr.mxu0 %v1754
  %1915 = vmatpush1.msra.mxu0 %v1753
  %1916 = vmatprep.subr.mxu0 %v1752
  %1917 = vmatpush1.msra.mxu0 %v1751
  %1918 = vmatprep.subr.mxu0 0.0
  %1919 = vmatpush2.msra.mxu0 0.0
  %1920 = vmatprep.subr.mxu0 0.0
  %1921 = vmatpush2.msra.mxu0 0.0
  %1922 = vmatprep.subr.mxu0 0.0
  %1923 = vmatpush2.msra.mxu0 0.0
  %1924 = vmatprep.subr.mxu0 0.0
  %1925 = vmatpush2.msra.mxu0 0.0
  %1926 = vmatprep.subr.mxu0 0.0
  %1927 = vmatpush2.msra.mxu0 0.0
  %1928 = vmatprep.subr.mxu0 0.0
  %1929 = vmatpush2.msra.mxu0 0.0
  %1930 = vmatprep.subr.mxu0 0.0
  %1931 = vmatpush2.msra.mxu0 0.0
  %1932 = vmatprep.subr.mxu0 0.0
  %1933 = vmatpush2.msra.mxu0 0.0
  %1934 = vmatprep.subr.mxu0 0.0
  %1935 = vmatpush2.msra.mxu0 0.0
  %1936 = vmatprep.subr.mxu0 0.0
  %1937 = vmatpush2.msra.mxu0 0.0
  %1938 = vmatprep.subr.mxu0 0.0
  %1939 = vmatpush2.msra.mxu0 0.0
  %1940 = vmatprep.subr.mxu0 0.0
  %1941 = vmatpush2.msra.mxu0 0.0
  %1942 = vmatprep.subr.mxu0 0.0
  %1943 = vmatpush2.msra.mxu0 0.0
  %1944 = vmatprep.subr.mxu0 0.0
  %1945 = vmatpush2.msra.mxu0 0.0
  %1946 = vmatprep.subr.mxu0 0.0
  %1947 = vmatpush2.msra.mxu0 0.0
  %1948 = vmatprep.subr.mxu0 0.0
  %1949 = vmatpush2.msra.mxu0 0.0
  %1950 = vmatprep.mubr.f32.mxu0 0.0
  %1951 = vmatmul.mubr.f32.gmra.mxu0 %v1716
  %v1952 = vpop.f32.mrf.mxu0
  %v1953 = vadd.f32 %v1882, %v1952
  %v1954 = vpop.f32.mrf.mxu0
  %v1955 = vadd.f32 %v1884, %v1954
  %1956 = vdwg.mxu0
  %v1957 = vld [vmem:[%s6] sm:$0x3]
  %v1959 = vlaneseq
  %v1960 = vshrl.u32 %v1959, 7
  %v1961 = vsub.s32 0, %v1960
  %v1962 = vrot.slane %v1957, %v1961
  %v1963 = vlaneseq
  %v1964 = vshrl.u32 %v1963, 7
  %v1965 = vsub.s32 1, %v1964
  %v1966 = vrot.slane %v1957, %v1965
  %v1969 = vadd.f32 %v1953, %v1962
  %v1970 = vadd.f32 %v1955, %v1966
  %1971 = vst [vmem:[%s7] sm:$0xff] %v1969
  %1972 = vst [vmem:[%s7 + $0x8] sm:$0xff] %v1970
  // Predicated region
  $region30: #{contrastive_classifier_forward.1} parent=0 // pred_check
    _
  $region31: #{contrastive_classifier_forward.1} parent=0 // pred_check_branch
    %1974 = sbr.rel (0) target = $region33
  $region32: #{contrastive_classifier_forward.1} parent=0 // pred_region
    _
  $region33: #{contrastive_classifier_forward.1} parent=0 // pred_fallthru
    _
  // Predicated region
  $region34: #{contrastive_classifier_forward.1} parent=0 // pred_check
    _
  $region35: #{contrastive_classifier_forward.1} parent=0 // pred_check_branch
    %1976 = sbr.rel (0) target = $region37
  $region36: #{contrastive_classifier_forward.1} parent=0 // pred_region
    _
  $region37: #{contrastive_classifier_forward.1} parent=0 // pred_fallthru
    _

</llo_original>
